<compile_context>
chip_gen: v7x
topology: tpu7x:2x2x1
jax: 0.10.0
libtpu: 0.0.40
codegen_flags: <defaults>
</compile_context>

<pallas_src>
import functools

import jax
import jax.numpy as jnp
from jax.experimental import pallas as pl
from jax.experimental.pallas import tpu as pltpu


def _round_up(x, m):
    return ((x + m - 1) // m) * m


def _pick_batch_tile(B):
    # As large as possible (amortizes ~0.35us/step overhead, fills MXU rows),
    # capped at 256, but keep >= 2 grid steps when B allows so v7x megacore
    # can split the parallel batch axis across its 2 TensorCores.
    if B <= 8:
        return 8
    return min(256, _round_up(pl.cdiv(B, 2), 8))


def decoder_kernel(z_ref, w1_ref, b1_ref, w2_ref, b2_ref, o_ref):
    z = z_ref[...].astype(jnp.float32)       # (TB, L)
    w1 = w1_ref[...].astype(jnp.float32)     # (L, H)
    TB, L = z.shape
    H = w1.shape[1]

    # --- Layer 1: Linear(L -> H) + ReLU ------------------------------------
    # latent_dim is tiny (2): an MXU contraction over K=2 pads K to 128/256 and
    # pays matmul push/pop latency for no useful work.  Unroll it as L broadcast
    # FMAs on the VPU instead and keep the MXU free for the second layer.
    if L <= 8:
        h = jnp.broadcast_to(b1_ref[...], (TB, H))   # bias broadcast, hoisted once
        for l in range(L):                           # static unroll over latent dims
            h = h + z[:, l:l + 1] * w1[l:l + 1, :]
    else:
        h = jnp.dot(z, w1, preferred_element_type=jnp.float32) + b1_ref[...]
    h = jnp.maximum(h, 0.0)

    # --- Layer 2: Linear(H -> D_pad) + Sigmoid ------------------------------
    # MXU matmul with f32 accumulation; if w2 arrives as bf16 the lhs is cast to
    # match (MXU-only bf16 — bias add / sigmoid stay f32 for v5e's VPU/EUP).
    w2 = w2_ref[...]
    y = jnp.dot(h.astype(w2.dtype), w2, preferred_element_type=jnp.float32)
    y = y + b2_ref[...]
    # Output last dim is padded to a multiple of 128 -> unmasked lane-dense stores.
    o_ref[...] = jax.nn.sigmoid(y).astype(o_ref.dtype)


def decoder_forward(z, w1, b1, w2, b2, *, batch_tile=None, weights_dtype=None):
    """Fused 2-layer decoder.  z: (B, latent_dim) float32 -> (B, in_features)."""
    B, L = z.shape
    Lw, H = w1.shape
    Hw, D = w2.shape
    assert L == Lw and H == Hw

    # Lane-dense output: pad output feature dim to a multiple of 128.
    D_pad = _round_up(D, 128)
    b1p = b1.reshape(1, H)
    b2p = b2.reshape(1, D)
    w2p = w2
    if D_pad != D:
        w2p = jnp.pad(w2p, ((0, 0), (0, D_pad - D)))
        b2p = jnp.pad(b2p, ((0, 0), (0, D_pad - D)))
    if weights_dtype is not None:
        # Optional bf16 MXU operands (halves w2 HBM bytes on v6e/v7x); w1 stays
        # f32 because layer 1 runs on the VPU (no bf16 VALU on v5e).
        w2p = w2p.astype(weights_dtype)

    # Pick / sanitize batch tile and pad batch so any B works.
    if batch_tile is None:
        batch_tile = _pick_batch_tile(B)
    batch_tile = max(8, _round_up(batch_tile, 8))
    B_pad = _round_up(B, batch_tile)
    zp = jnp.pad(z, ((0, B_pad - B), (0, 0))) if B_pad != B else z

    grid = (B_pad // batch_tile,)

    cost = pl.CostEstimate(
        flops=2 * B_pad * (L * H + H * D_pad),
        transcendentals=B_pad * D_pad,  # one exp per sigmoid output element
        bytes_accessed=4 * (B_pad * L + L * H + H) + H * D_pad * w2p.dtype.itemsize
        + 4 * (D_pad + B_pad * D_pad),
    )

    out = pl.pallas_call(
        decoder_kernel,
        out_shape=jax.ShapeDtypeStruct((B_pad, D_pad), z.dtype),
        grid_spec=pltpu.PrefetchScalarGridSpec(
            num_scalar_prefetch=0,
            grid=grid,
            in_specs=[
                # z: tile over batch (sublane axis).
                pl.BlockSpec((batch_tile, L), lambda i: (i, 0)),
                # Weights / biases: full arrays, resident across all grid steps.
                # TODO(synk): if H/D are scaled far beyond VAE sizes, add a grid
                # axis over D and tile w2/b2/out (watch v7x's 64 MiB VMEM).
                pl.BlockSpec((L, H), lambda i: (0, 0)),
                pl.BlockSpec((1, H), lambda i: (0, 0)),
                pl.BlockSpec((H, D_pad), lambda i: (0, 0)),
                pl.BlockSpec((1, D_pad), lambda i: (0, 0)),
            ],
            out_specs=pl.BlockSpec((batch_tile, D_pad), lambda i: (i, 0)),
        ),
        compiler_params=pltpu.CompilerParams(
            dimension_semantics=("parallel",),
        ),
        cost_estimate=cost,
    )(zp, w1, b1p, w2p, b2p)

    # Slice off batch / lane padding.
    return out[:B, :D]


def init_decoder_params(key, latent_dim, d_hidden, in_features):
    """Deterministic init mimicking PyTorch nn.Linear default U[-1/sqrt(fan_in), 1/sqrt(fan_in)]."""
    k1, k2, k3, k4 = jax.random.split(key, 4)
    bound1 = 1.0 / jnp.sqrt(latent_dim)
    bound2 = 1.0 / jnp.sqrt(d_hidden)
    w1 = jax.random.uniform(k1, (latent_dim, d_hidden), jnp.float32, -bound1, bound1)
    b1 = jax.random.uniform(k2, (1, d_hidden), jnp.float32, -bound1, bound1)
    w2 = jax.random.uniform(k3, (d_hidden, in_features), jnp.float32, -bound2, bound2)
    b2 = jax.random.uniform(k4, (1, in_features), jnp.float32, -bound2, bound2)
    return w1, b1, w2, b2


if __name__ == "__main__":
    # Shapes implied by the module: z (B, 2) -> x_recon (B, 28*28), d_hidden=256.
    batch = 256
    latent_dim = 2
    d_hidden = 256
    in_features = 28 * 28  # 784 -> padded to 896 lanes internally

    key = jax.random.PRNGKey(0)
    kz, kp = jax.random.split(key)
    z = jax.random.normal(kz, (batch, latent_dim), jnp.float32)
    w1, b1, w2, b2 = init_decoder_params(kp, latent_dim, d_hidden, in_features)

    out = decoder_forward(z, w1, b1, w2, b2)  # auto batch_tile=128 -> grid=(2,)
    out = jax.block_until_ready(out)

    # Pure-JAX reference of the same math.
    h_ref = jnp.maximum(z @ w1 + b1, 0.0)
    ref = jax.nn.sigmoid(h_ref @ w2 + b2)
    assert out.shape == (batch, in_features)
    assert jnp.allclose(out, ref, atol=1e-5, rtol=1e-5), float(
        jnp.max(jnp.abs(out - ref)))

    print("KERNEL_OK")
</pallas_src>

<mosaic_0001>
module attributes {stable_mosaic.version = 11 : i64} {
  func.func @decoder_kernel(%arg0: i32, %arg1: memref<128x2xf32, #tpu.memory_space<vmem>>, %arg2: memref<2x256xf32, #tpu.memory_space<vmem>>, %arg3: memref<1x256xf32, #tpu.memory_space<vmem>>, %arg4: memref<256x896xf32, #tpu.memory_space<vmem>>, %arg5: memref<1x896xf32, #tpu.memory_space<vmem>>, %arg6: memref<128x896xf32, #tpu.memory_space<vmem>>) attributes {dimension_semantics = [#tpu.dimension_semantics<parallel>], iteration_bounds = array<i64: 2>, scalar_prefetch = 0 : i64, scratch_operands = 0 : i64, tpu.core_type = #tpu.core_type<tc>, window_params = [{transform_indices = @transform_0, window_bounds = array<i64: 128, 2>}, {pipeline_mode = #tpu.pipeline_mode<synchronous>, transform_indices = @transform_1, window_bounds = array<i64: 2, 256>}, {pipeline_mode = #tpu.pipeline_mode<synchronous>, transform_indices = @transform_2, window_bounds = array<i64: 1, 256>}, {pipeline_mode = #tpu.pipeline_mode<synchronous>, transform_indices = @transform_3, window_bounds = array<i64: 256, 896>}, {pipeline_mode = #tpu.pipeline_mode<synchronous>, transform_indices = @transform_4, window_bounds = array<i64: 1, 896>}, {transform_indices = @transform_5, window_bounds = array<i64: 128, 896>}]} {
    %c0 = arith.constant 0 : index
    %c0_0 = arith.constant 0 : index
    %0 = vector.load %arg1[%c0, %c0_0] : memref<128x2xf32, #tpu.memory_space<vmem>>, vector<128x2xf32>
    %c0_1 = arith.constant 0 : index
    %c0_2 = arith.constant 0 : index
    %1 = vector.load %arg2[%c0_1, %c0_2] : memref<2x256xf32, #tpu.memory_space<vmem>>, vector<2x256xf32>
    %c0_3 = arith.constant 0 : index
    %c0_4 = arith.constant 0 : index
    %2 = vector.load %arg3[%c0_3, %c0_4] : memref<1x256xf32, #tpu.memory_space<vmem>>, vector<1x256xf32>
    %3 = vector.shape_cast %2 : vector<1x256xf32> to vector<1x256xf32>
    %4 = vector.broadcast %3 : vector<1x256xf32> to vector<128x256xf32>
    %5 = vector.extract_strided_slice %0 {offsets = [0, 0], sizes = [128, 1], strides = [1, 1]} : vector<128x2xf32> to vector<128x1xf32>
    %6 = vector.extract_strided_slice %1 {offsets = [0, 0], sizes = [1, 256], strides = [1, 1]} : vector<2x256xf32> to vector<1x256xf32>
    %7 = vector.broadcast %5 : vector<128x1xf32> to vector<128x256xf32>
    %8 = vector.broadcast %6 : vector<1x256xf32> to vector<128x256xf32>
    %9 = arith.mulf %7, %8 : vector<128x256xf32>
    %10 = arith.addf %4, %9 : vector<128x256xf32>
    %11 = vector.extract_strided_slice %0 {offsets = [0, 1], sizes = [128, 1], strides = [1, 1]} : vector<128x2xf32> to vector<128x1xf32>
    %12 = vector.extract_strided_slice %1 {offsets = [1, 0], sizes = [1, 256], strides = [1, 1]} : vector<2x256xf32> to vector<1x256xf32>
    %13 = vector.broadcast %11 : vector<128x1xf32> to vector<128x256xf32>
    %14 = vector.broadcast %12 : vector<1x256xf32> to vector<128x256xf32>
    %15 = arith.mulf %13, %14 : vector<128x256xf32>
    %16 = arith.addf %10, %15 : vector<128x256xf32>
    %cst = arith.constant 0.000000e+00 : f32
    %17 = vector.broadcast %cst : f32 to vector<128x256xf32>
    %18 = arith.maximumf %16, %17 : vector<128x256xf32>
    %c0_5 = arith.constant 0 : index
    %c0_6 = arith.constant 0 : index
    %19 = vector.load %arg4[%c0_5, %c0_6] : memref<256x896xf32, #tpu.memory_space<vmem>>, vector<256x896xf32>
    %cst_7 = arith.constant dense<0.000000e+00> : vector<128x896xf32>
    %20 = tpu.matmul %18, %19, %cst_7 {dimension_numbers = #tpu.dot_dimension_numbers<[1], [0], [0], [1], [0, 0, 1, 1], [], []>} : vector<128x256xf32>, vector<256x896xf32>, vector<128x896xf32> -> vector<128x896xf32>
    %c0_8 = arith.constant 0 : index
    %c0_9 = arith.constant 0 : index
    %21 = vector.load %arg5[%c0_8, %c0_9] : memref<1x896xf32, #tpu.memory_space<vmem>>, vector<1x896xf32>
    %22 = vector.broadcast %21 : vector<1x896xf32> to vector<128x896xf32>
    %23 = arith.addf %20, %22 : vector<128x896xf32>
    %24 = arith.negf %23 : vector<128x896xf32>
    %25 = math.exp %24 : vector<128x896xf32>
    %cst_10 = arith.constant 1.000000e+00 : f32
    %26 = vector.broadcast %cst_10 : f32 to vector<128x896xf32>
    %27 = arith.addf %26, %25 : vector<128x896xf32>
    %28 = arith.divf %26, %27 : vector<128x896xf32>
    %c0_11 = arith.constant 0 : index
    %c0_12 = arith.constant 0 : index
    %29 = vector.load %arg6[%c0_11, %c0_12] : memref<128x896xf32, #tpu.memory_space<vmem>>, vector<128x896xf32>
    tpu.vector_store %arg6[%c0_11, %c0_12], %28 {strides = array<i32>} : memref<128x896xf32, #tpu.memory_space<vmem>>, vector<128x896xf32>,
    return
  }
  func.func @transform_0(%arg0: i32) -> (i32, i32) {
    %c0_i32 = arith.constant 0 : i32
    %c0_i32_0 = arith.constant 0 : i32
    return %arg0, %c0_i32 : i32, i32
  }
  func.func @transform_1(%arg0: i32) -> (i32, i32) {
    %c0_i32 = arith.constant 0 : i32
    %c0_i32_0 = arith.constant 0 : i32
    %c0_i32_1 = arith.constant 0 : i32
    return %c0_i32, %c0_i32_0 : i32, i32
  }
  func.func @transform_2(%arg0: i32) -> (i32, i32) {
    %c0_i32 = arith.constant 0 : i32
    %c0_i32_0 = arith.constant 0 : i32
    %c0_i32_1 = arith.constant 0 : i32
    return %c0_i32, %c0_i32_0 : i32, i32
  }
  func.func @transform_3(%arg0: i32) -> (i32, i32) {
    %c0_i32 = arith.constant 0 : i32
    %c0_i32_0 = arith.constant 0 : i32
    %c0_i32_1 = arith.constant 0 : i32
    return %c0_i32, %c0_i32_0 : i32, i32
  }
  func.func @transform_4(%arg0: i32) -> (i32, i32) {
    %c0_i32 = arith.constant 0 : i32
    %c0_i32_0 = arith.constant 0 : i32
    %c0_i32_1 = arith.constant 0 : i32
    return %c0_i32, %c0_i32_0 : i32, i32
  }
  func.func @transform_5(%arg0: i32) -> (i32, i32) {
    %c0_i32 = arith.constant 0 : i32
    %c0_i32_0 = arith.constant 0 : i32
    return %arg0, %c0_i32 : i32, i32
  }
}

</mosaic_0001>

<llo_original>
// kernel: tpu_custom_call.1
$region0: #{tpu_custom_call.1}
  #allocation0 [shape = 'u32[]', space=smem, size = 0x4, offset = 0x4, fixed_abs, tag = 'smem constant byte address 0x4 - core index']
  #allocation1 [shape = 'u32[144,128]{1,0:T(1,128)}', space=vmem, size = 0x12000, scoped, tag = 'internal scratch']
  %s0 = inlined_call_operand.vmem [shape: f32[256,2], index: 0, kind: input, shape index: {}]
  %s1 = inlined_call_operand.vmem [shape: f32[2,256], index: 1, kind: input, shape index: {}]
  %s2 = inlined_call_operand.vmem [shape: f32[1,256], index: 2, kind: input, shape index: {}]
  %s3 = inlined_call_operand.hbm [shape: f32[256,896], index: 3, kind: input, shape index: {}]
  %s4 = inlined_call_operand.vmem [shape: f32[1,896], index: 4, kind: input, shape index: {}]
  %s5 = inlined_call_operand.hbm [shape: f32[256,896], index: 5, kind: output, shape index: {}]
  %s6 = sld [smem:[#allocation0]]
  $region57: #{tpu_custom_call.1} parent=0
    _
  %s8 = ssub.s32 1, %s6
  %s9 = scalar_select 0, %s8, %s6
  $region1: #{tpu_custom_call.1} parent=0
    #allocation2 [shape = 'u8[917504]{0}', space=vmem, size = 0xe0000, scoped, tag = 'input window, operand 3, single buffered']
    #allocation3 [shape = 's32[2]{0}', space=sflag, size = 0x8, scoped, tag = 'scoped memory for tpu_custom_call.1']
    #allocation4 [shape = 's32[2]{0}', space=sflag, size = 0x8, scoped, tag = 'scoped memory for tpu_custom_call.1']
    #allocation5 [shape = 'u8[917504]{0}', space=vmem, size = 0xe0000, scoped, tag = 'output window, operand 0']
    %10 = vsyncpa [#allocation3], 0
    %11 = vsyncpa [#allocation4], 0
    %s12 = scalar_lea.sflag [#allocation4], 1
    %13 = vsyncpa %s12, 0
    loop: start=0, step=1, limit=4
    $region2: #{tpu_custom_call.1} parent=1 // loop_pre_header
      _
    $region3: #{tpu_custom_call.1} parent=1 // loop_header
      %s15 = sphi 0, %s19
      %p16 = scmp.ge.s32.totalorder %s15, 4
      %s25 = sphi 0, %s27
      %s28 = sphi 0, %s25
      %s29 = sphi 0, %s28
      %s45 = sphi 0, %s29
      %s49 = sphi 0, %s49
      %s51 = sphi 0, %s49
      %s52 = sphi 0, %s51
      %s66 = sphi 0, %s52
      %s70 = sphi 0, %s70
      %s72 = sphi 0, %s70
      %s73 = sphi 0, %s72
      %s87 = sphi 0, %s73
      %s91 = sphi 0, %s91
      %s93 = sphi 0, %s91
      %s94 = sphi 0, %s93
      %s108 = sphi 0, %s94
      %s112 = sphi 0, %s112
      %s114 = sphi 0, %s112
      %s115 = sphi 0, %s114
      %s129 = sphi 0, %s115
      %s135 = sphi 0, %s137
      %s138 = sphi 0, %s135
      %s139 = sphi 0, %s138
      %s155 = sphi 0, %s139
    $region4: #{tpu_custom_call.1} parent=1 // loop_header_branch
      %18 = sbr.rel (%p16) target = $region8
    $region5: #{tpu_custom_call.1} parent=1 // loop_body
      %s20 = ssub.s32 %s15, 1
      %s21 = ssub.s32 %s15, 2
      %s22 = sadd.s32 %s15, 1
      %s23 = ssub.s32 %s15, %s22
      %p24 = scmp.eq.s32.totalorder %s23, 0
      %s26 = sadd.s32 %s25, 1
      %s27 = scalar_select %p24, %s25, %s26
      %p30 = pneg %p24
      %p31 = scmp.eq.s32.totalorder %s15, 1
      %p32 = por %p30, %p31
      %p33 = scmp.ne.s32.totalorder %s25, %s28
      %p34 = scmp.eq.s32.totalorder %s15, 0
      %p35 = por %p33, %p34
      %p36 = scmp.ne.s32.totalorder %s25, %s28
      %p37 = scmp.eq.s32.totalorder %s20, 1
      %p38 = por %p36, %p37
      %p39 = scmp.ne.s32.totalorder %s28, %s29
      %p40 = scmp.eq.s32.totalorder %s20, 0
      %p41 = por %p39, %p40
      %p42 = scmp.ne.s32.totalorder %s28, %s29
      %p43 = scmp.eq.s32.totalorder %s21, 1
      %p44 = por %p42, %p43
      %p46 = scmp.ne.s32.totalorder %s29, %s45
      %p47 = scmp.eq.s32.totalorder %s21, 0
      %p48 = por %p46, %p47
      %s50 = sadd.s32 %s49, 1
      %p53 = scmp.eq.s32.totalorder %s15, 1
      %p54 = scmp.ne.s32.totalorder %s49, %s51
      %p55 = scmp.eq.s32.totalorder %s15, 0
      %p56 = por %p54, %p55
      %p57 = scmp.ne.s32.totalorder %s49, %s51
      %p58 = scmp.eq.s32.totalorder %s20, 1
      %p59 = por %p57, %p58
      %p60 = scmp.ne.s32.totalorder %s51, %s52
      %p61 = scmp.eq.s32.totalorder %s20, 0
      %p62 = por %p60, %p61
      %p63 = scmp.ne.s32.totalorder %s51, %s52
      %p64 = scmp.eq.s32.totalorder %s21, 1
      %p65 = por %p63, %p64
      %p67 = scmp.ne.s32.totalorder %s52, %s66
      %p68 = scmp.eq.s32.totalorder %s21, 0
      %p69 = por %p67, %p68
      %s71 = sadd.s32 %s70, 1
      %p74 = scmp.eq.s32.totalorder %s15, 1
      %p75 = scmp.ne.s32.totalorder %s70, %s72
      %p76 = scmp.eq.s32.totalorder %s15, 0
      %p77 = por %p75, %p76
      %p78 = scmp.ne.s32.totalorder %s70, %s72
      %p79 = scmp.eq.s32.totalorder %s20, 1
      %p80 = por %p78, %p79
      %p81 = scmp.ne.s32.totalorder %s72, %s73
      %p82 = scmp.eq.s32.totalorder %s20, 0
      %p83 = por %p81, %p82
      %p84 = scmp.ne.s32.totalorder %s72, %s73
      %p85 = scmp.eq.s32.totalorder %s21, 1
      %p86 = por %p84, %p85
      %p88 = scmp.ne.s32.totalorder %s73, %s87
      %p89 = scmp.eq.s32.totalorder %s21, 0
      %p90 = por %p88, %p89
      %s92 = sadd.s32 %s91, 1
      %p95 = scmp.eq.s32.totalorder %s15, 1
      %p96 = scmp.ne.s32.totalorder %s91, %s93
      %p97 = scmp.eq.s32.totalorder %s15, 0
      %p98 = por %p96, %p97
      %p99 = scmp.ne.s32.totalorder %s91, %s93
      %p100 = scmp.eq.s32.totalorder %s20, 1
      %p101 = por %p99, %p100
      %p102 = scmp.ne.s32.totalorder %s93, %s94
      %p103 = scmp.eq.s32.totalorder %s20, 0
      %p104 = por %p102, %p103
      %p105 = scmp.ne.s32.totalorder %s93, %s94
      %p106 = scmp.eq.s32.totalorder %s21, 1
      %p107 = por %p105, %p106
      %p109 = scmp.ne.s32.totalorder %s94, %s108
      %p110 = scmp.eq.s32.totalorder %s21, 0
      %p111 = por %p109, %p110
      %s113 = sadd.s32 %s112, 1
      %p116 = scmp.eq.s32.totalorder %s15, 1
      %p117 = scmp.ne.s32.totalorder %s112, %s114
      %p118 = scmp.eq.s32.totalorder %s15, 0
      %p119 = por %p117, %p118
      %p120 = scmp.ne.s32.totalorder %s112, %s114
      %p121 = scmp.eq.s32.totalorder %s20, 1
      %p122 = por %p120, %p121
      %p123 = scmp.ne.s32.totalorder %s114, %s115
      %p124 = scmp.eq.s32.totalorder %s20, 0
      %p125 = por %p123, %p124
      %p126 = scmp.ne.s32.totalorder %s114, %s115
      %p127 = scmp.eq.s32.totalorder %s21, 1
      %p128 = por %p126, %p127
      %p130 = scmp.ne.s32.totalorder %s115, %s129
      %p131 = scmp.eq.s32.totalorder %s21, 0
      %p132 = por %p130, %p131
      %s133 = ssub.s32 %s15, %s22
      %p134 = scmp.eq.s32.totalorder %s133, 0
      %s136 = sadd.s32 %s135, 1
      %s137 = scalar_select %p134, %s135, %s136
      %p140 = pneg %p134
      %p141 = scmp.eq.s32.totalorder %s15, 1
      %p142 = por %p140, %p141
      %p143 = scmp.ne.s32.totalorder %s135, %s138
      %p144 = scmp.eq.s32.totalorder %s15, 0
      %p145 = por %p143, %p144
      %p146 = scmp.ne.s32.totalorder %s135, %s138
      %p147 = scmp.eq.s32.totalorder %s20, 1
      %p148 = por %p146, %p147
      %p149 = scmp.ne.s32.totalorder %s138, %s139
      %p150 = scmp.eq.s32.totalorder %s20, 0
      %p151 = por %p149, %p150
      %p152 = scmp.ne.s32.totalorder %s138, %s139
      %p153 = scmp.eq.s32.totalorder %s21, 1
      %p154 = por %p152, %p153
      %p156 = scmp.ne.s32.totalorder %s139, %s155
      %p157 = scmp.eq.s32.totalorder %s21, 0
      %p158 = por %p156, %p157
      %p159 = scmp.le.s32.totalorder 1, %s15
      %p160 = scmp.lt.s32.totalorder %s15, 3
      %p161 = pnand %p159, %p160
      %p162 = pneg %p161
      // Predicated region
      $region9: #{tpu_custom_call.1} parent=5 // pred_check
        _
      $region10: #{tpu_custom_call.1} parent=5 // pred_check_branch
        %164 = sbr.rel (%p161) target = $region12
      $region11: #{tpu_custom_call.1} parent=5 // pred_region
        %s165 = ssub.s32 %s15, 1
        // Predicated region
        $region13: #{tpu_custom_call.1} parent=11 // pred_check
          %p166 = pneg %p62
        $region14: #{tpu_custom_call.1} parent=11 // pred_check_branch
          %168 = sbr.rel (%p166) target = $region16
        $region15: #{tpu_custom_call.1} parent=11 // pred_region
          _
        $region16: #{tpu_custom_call.1} parent=11 // pred_fallthru
          _
        // Predicated region
        $region17: #{tpu_custom_call.1} parent=11 // pred_check
          %p169 = pneg %p83
        $region18: #{tpu_custom_call.1} parent=11 // pred_check_branch
          %171 = sbr.rel (%p169) target = $region20
        $region19: #{tpu_custom_call.1} parent=11 // pred_region
          _
        $region20: #{tpu_custom_call.1} parent=11 // pred_fallthru
          _
        // Predicated region
        $region21: #{tpu_custom_call.1} parent=11 // pred_check
          %p172 = pneg %p104
        $region22: #{tpu_custom_call.1} parent=11 // pred_check_branch
          %174 = sbr.rel (%p172) target = $region24
        $region23: #{tpu_custom_call.1} parent=11 // pred_region
          %s176 = ssub.s32 28672, 28672
          %177 = vsyncadd [#allocation3], %s176
          %s178 = sshll.u32 [#allocation2], 4
          %s179 = int_to_ptr.vmem [resolvable:$true] %s178
          %184 = dma.hbm_to_vmem [thread:$0]  %s3, 28672, %s179, [#allocation3], 896, 896, 56
        $region24: #{tpu_custom_call.1} parent=11 // pred_fallthru
          _
        // Predicated region
        $region25: #{tpu_custom_call.1} parent=11 // pred_check
          %p185 = pneg %p125
        $region26: #{tpu_custom_call.1} parent=11 // pred_check_branch
          %187 = sbr.rel (%p185) target = $region28
        $region27: #{tpu_custom_call.1} parent=11 // pred_region
          _
        $region28: #{tpu_custom_call.1} parent=11 // pred_fallthru
          _
      $region12: #{tpu_custom_call.1} parent=5 // pred_fallthru
        _
      %p188 = scmp.lt.s32.totalorder %s15, 2
      // Predicated region
      $region29: #{tpu_custom_call.1} parent=5 // pred_check
        %p189 = pneg %p188
      $region30: #{tpu_custom_call.1} parent=5 // pred_check_branch
        %191 = sbr.rel (%p189) target = $region32
      $region31: #{tpu_custom_call.1} parent=5 // pred_region
        // Predicated region
        $region33: #{tpu_custom_call.1} parent=31 // pred_check
          %p192 = pneg %p35
        $region34: #{tpu_custom_call.1} parent=31 // pred_check_branch
          %194 = sbr.rel (%p192) target = $region36
        $region35: #{tpu_custom_call.1} parent=31 // pred_region
          %s195 = smul.u32 16, %s15
          %p196 = scmp.lt.s32.totalorder %s195, 31
          %s197 = scalar_select %p196, %s195, 31
          %s198 = smul.addr %s197, 8
          %s199 = scalar_lea.vmem %s0, %s198
          %s200 = smul.u32 16, %s15
        $region36: #{tpu_custom_call.1} parent=31 // pred_fallthru
          _
      $region32: #{tpu_custom_call.1} parent=5 // pred_fallthru
        _
      %p201 = scmp.le.s32.totalorder 1, %s15
      %p202 = scmp.lt.s32.totalorder %s15, 3
      %p203 = pnand %p201, %p202
      %p204 = pneg %p203
      // Predicated region
      $region37: #{tpu_custom_call.1} parent=5 // pred_check
        _
      $region38: #{tpu_custom_call.1} parent=5 // pred_check_branch
        %206 = sbr.rel (%p203) target = $region40
      $region39: #{tpu_custom_call.1} parent=5 // pred_region
        %s207 = ssub.s32 %s15, 1
        // Predicated region
        $region41: #{tpu_custom_call.1} parent=39 // pred_check
          %p208 = pneg %p104
        $region42: #{tpu_custom_call.1} parent=39 // pred_check_branch
          %210 = sbr.rel (%p208) target = $region44
        $region43: #{tpu_custom_call.1} parent=39 // pred_region
          %211 = dma.done [#allocation3], 28672
        $region44: #{tpu_custom_call.1} parent=39 // pred_fallthru
          _
        %s212 = smul.u32 16, %s20
        %p213 = scmp.lt.s32.totalorder %s212, 31
        %s214 = scalar_select %p213, %s212, 31
        %s215 = smul.addr %s214, 8
        %s216 = scalar_lea.vmem %s0, %s215
        %p217 = pneg %p41
        %p218 = pneg %p38
        %p219 = pneg %p62
        %p220 = pneg %p59
        %p221 = pneg %p83
        %p222 = pneg %p80
        %p223 = pneg %p104
        %p224 = pneg %p101
        %p225 = pneg %p125
        %p226 = pneg %p122
        %p227 = pneg %p151
        %p228 = pneg %p148
        %s229 = sand.u32 %s138, 1
        %s230 = scalar_lea.sflag [#allocation4], %s229
        %s231 = sand.u32 %s138, 1
        %s232 = smul.addr %s231, 896
        %s233 = scalar_lea.vmem [#allocation5], %s232
        %s234 = smul.u32 16, %s20
        %p235 = scmp.lt.s32.totalorder %s234, 31
        %s236 = scalar_select %p235, %s234, 31
        %s237 = smul.addr %s236, 8
        %s238 = scalar_lea.vmem %s0, %s237
        %s239 = smul.u32 16, %s20
        %s240 = smul.u32 16, %s20
        %v241 = vld [vmem:[%s238] sm:$0xff]
        %v242 = vld [vmem:[%s238 + $0x8] sm:$0xff]
        %v243 = vld [vmem:[%s238 + $0x10] sm:$0xff]
        %v244 = vld [vmem:[%s238 + $0x18] sm:$0xff]
        %v245 = vld [vmem:[%s238 + $0x20] sm:$0xff]
        %v246 = vld [vmem:[%s238 + $0x28] sm:$0xff]
        %v247 = vld [vmem:[%s238 + $0x30] sm:$0xff]
        %v248 = vld [vmem:[%s238 + $0x38] sm:$0xff]
        %v249 = vld [vmem:[%s238 + $0x40] sm:$0xff]
        %v250 = vld [vmem:[%s238 + $0x48] sm:$0xff]
        %v251 = vld [vmem:[%s238 + $0x50] sm:$0xff]
        %v252 = vld [vmem:[%s238 + $0x58] sm:$0xff]
        %v253 = vld [vmem:[%s238 + $0x60] sm:$0xff]
        %v254 = vld [vmem:[%s238 + $0x68] sm:$0xff]
        %v255 = vld [vmem:[%s238 + $0x70] sm:$0xff]
        %v256 = vld [vmem:[%s238 + $0x78] sm:$0xff]
        %v257 = vld [vmem:[%s1] sm:$0xf]
        %v258 = vld [vmem:[%s2] sm:$0x3]
        %v260 = vlaneseq
        %v261 = vshrl.u32 %v260, 7
        %v262 = vsub.s32 0, %v261
        %v263 = vrot.slane %v258, %v262
        %v264 = vlaneseq
        %v265 = vshrl.u32 %v264, 7
        %v266 = vsub.s32 1, %v265
        %v267 = vrot.slane %v258, %v266
        %271 = vset.pattern.permute.xlu0 0
        %272 = vperm.xlu0 %271, %v241
        %v273 = vpop.permute.xlu0 %272
        %276 = vset.pattern.permute.xlu0 0
        %277 = vperm.xlu0 %276, %v242
        %v278 = vpop.permute.xlu0 %277
        %281 = vset.pattern.permute.xlu0 0
        %282 = vperm.xlu0 %281, %v243
        %v283 = vpop.permute.xlu0 %282
        %286 = vset.pattern.permute.xlu0 0
        %287 = vperm.xlu0 %286, %v244
        %v288 = vpop.permute.xlu0 %287
        %291 = vset.pattern.permute.xlu0 0
        %292 = vperm.xlu0 %291, %v245
        %v293 = vpop.permute.xlu0 %292
        %296 = vset.pattern.permute.xlu0 0
        %297 = vperm.xlu0 %296, %v246
        %v298 = vpop.permute.xlu0 %297
        %301 = vset.pattern.permute.xlu0 0
        %302 = vperm.xlu0 %301, %v247
        %v303 = vpop.permute.xlu0 %302
        %306 = vset.pattern.permute.xlu0 0
        %307 = vperm.xlu0 %306, %v248
        %v308 = vpop.permute.xlu0 %307
        %311 = vset.pattern.permute.xlu0 0
        %312 = vperm.xlu0 %311, %v249
        %v313 = vpop.permute.xlu0 %312
        %316 = vset.pattern.permute.xlu0 0
        %317 = vperm.xlu0 %316, %v250
        %v318 = vpop.permute.xlu0 %317
        %321 = vset.pattern.permute.xlu0 0
        %322 = vperm.xlu0 %321, %v251
        %v323 = vpop.permute.xlu0 %322
        %326 = vset.pattern.permute.xlu0 0
        %327 = vperm.xlu0 %326, %v252
        %v328 = vpop.permute.xlu0 %327
        %331 = vset.pattern.permute.xlu0 0
        %332 = vperm.xlu0 %331, %v253
        %v333 = vpop.permute.xlu0 %332
        %336 = vset.pattern.permute.xlu0 0
        %337 = vperm.xlu0 %336, %v254
        %v338 = vpop.permute.xlu0 %337
        %341 = vset.pattern.permute.xlu0 0
        %342 = vperm.xlu0 %341, %v255
        %v343 = vpop.permute.xlu0 %342
        %346 = vset.pattern.permute.xlu0 0
        %347 = vperm.xlu0 %346, %v256
        %v348 = vpop.permute.xlu0 %347
        %v351 = vlaneseq
        %v352 = vshrl.u32 %v351, 7
        %v353 = vsub.s32 0, %v352
        %v354 = vrot.slane %v257, %v353
        %v355 = vlaneseq
        %v356 = vshrl.u32 %v355, 7
        %v357 = vsub.s32 2, %v356
        %v358 = vrot.slane %v257, %v357
        %v361 = vlaneseq
        %v362 = vshrl.u32 %v361, 7
        %v363 = vsub.s32 0, %v362
        %v364 = vrot.slane %v354, %v363
        %v365 = vlaneseq
        %v366 = vshrl.u32 %v365, 7
        %v367 = vsub.s32 0, %v366
        %v368 = vrot.slane %v358, %v367
        %v369 = vmul.f32 %v273, %v364
        %v370 = vmul.f32 %v273, %v368
        %v371 = vmul.f32 %v278, %v364
        %v372 = vmul.f32 %v278, %v368
        %v373 = vmul.f32 %v283, %v364
        %v374 = vmul.f32 %v283, %v368
        %v375 = vmul.f32 %v288, %v364
        %v376 = vmul.f32 %v288, %v368
        %v377 = vmul.f32 %v293, %v364
        %v378 = vmul.f32 %v293, %v368
        %v379 = vmul.f32 %v298, %v364
        %v380 = vmul.f32 %v298, %v368
        %v381 = vmul.f32 %v303, %v364
        %v382 = vmul.f32 %v303, %v368
        %v383 = vmul.f32 %v308, %v364
        %v384 = vmul.f32 %v308, %v368
        %v385 = vmul.f32 %v313, %v364
        %v386 = vmul.f32 %v313, %v368
        %v387 = vmul.f32 %v318, %v364
        %v388 = vmul.f32 %v318, %v368
        %v389 = vmul.f32 %v323, %v364
        %v390 = vmul.f32 %v323, %v368
        %v391 = vmul.f32 %v328, %v364
        %v392 = vmul.f32 %v328, %v368
        %v393 = vmul.f32 %v333, %v364
        %v394 = vmul.f32 %v333, %v368
        %v395 = vmul.f32 %v338, %v364
        %v396 = vmul.f32 %v338, %v368
        %v397 = vmul.f32 %v343, %v364
        %v398 = vmul.f32 %v343, %v368
        %v399 = vmul.f32 %v348, %v364
        %v400 = vmul.f32 %v348, %v368
        %v401 = vadd.f32 %v263, %v369
        %v402 = vadd.f32 %v267, %v370
        %v403 = vadd.f32 %v263, %v371
        %v404 = vadd.f32 %v267, %v372
        %v405 = vadd.f32 %v263, %v373
        %v406 = vadd.f32 %v267, %v374
        %v407 = vadd.f32 %v263, %v375
        %v408 = vadd.f32 %v267, %v376
        %v409 = vadd.f32 %v263, %v377
        %v410 = vadd.f32 %v267, %v378
        %v411 = vadd.f32 %v263, %v379
        %v412 = vadd.f32 %v267, %v380
        %v413 = vadd.f32 %v263, %v381
        %v414 = vadd.f32 %v267, %v382
        %v415 = vadd.f32 %v263, %v383
        %v416 = vadd.f32 %v267, %v384
        %v417 = vadd.f32 %v263, %v385
        %v418 = vadd.f32 %v267, %v386
        %v419 = vadd.f32 %v263, %v387
        %v420 = vadd.f32 %v267, %v388
        %v421 = vadd.f32 %v263, %v389
        %v422 = vadd.f32 %v267, %v390
        %v423 = vadd.f32 %v263, %v391
        %v424 = vadd.f32 %v267, %v392
        %v425 = vadd.f32 %v263, %v393
        %v426 = vadd.f32 %v267, %v394
        %v427 = vadd.f32 %v263, %v395
        %v428 = vadd.f32 %v267, %v396
        %v429 = vadd.f32 %v263, %v397
        %v430 = vadd.f32 %v267, %v398
        %v431 = vadd.f32 %v263, %v399
        %v432 = vadd.f32 %v267, %v400
        %433 = vset.pattern.permute.xlu0 1
        %434 = vperm.xlu0 %433, %v241
        %v435 = vpop.permute.xlu0 %434
        %437 = vset.pattern.permute.xlu0 1
        %438 = vperm.xlu0 %437, %v242
        %v439 = vpop.permute.xlu0 %438
        %441 = vset.pattern.permute.xlu0 1
        %442 = vperm.xlu0 %441, %v243
        %v443 = vpop.permute.xlu0 %442
        %445 = vset.pattern.permute.xlu0 1
        %446 = vperm.xlu0 %445, %v244
        %v447 = vpop.permute.xlu0 %446
        %449 = vset.pattern.permute.xlu0 1
        %450 = vperm.xlu0 %449, %v245
        %v451 = vpop.permute.xlu0 %450
        %453 = vset.pattern.permute.xlu0 1
        %454 = vperm.xlu0 %453, %v246
        %v455 = vpop.permute.xlu0 %454
        %457 = vset.pattern.permute.xlu0 1
        %458 = vperm.xlu0 %457, %v247
        %v459 = vpop.permute.xlu0 %458
        %461 = vset.pattern.permute.xlu0 1
        %462 = vperm.xlu0 %461, %v248
        %v463 = vpop.permute.xlu0 %462
        %465 = vset.pattern.permute.xlu0 1
        %466 = vperm.xlu0 %465, %v249
        %v467 = vpop.permute.xlu0 %466
        %469 = vset.pattern.permute.xlu0 1
        %470 = vperm.xlu0 %469, %v250
        %v471 = vpop.permute.xlu0 %470
        %473 = vset.pattern.permute.xlu0 1
        %474 = vperm.xlu0 %473, %v251
        %v475 = vpop.permute.xlu0 %474
        %477 = vset.pattern.permute.xlu0 1
        %478 = vperm.xlu0 %477, %v252
        %v479 = vpop.permute.xlu0 %478
        %481 = vset.pattern.permute.xlu0 1
        %482 = vperm.xlu0 %481, %v253
        %v483 = vpop.permute.xlu0 %482
        %485 = vset.pattern.permute.xlu0 1
        %486 = vperm.xlu0 %485, %v254
        %v487 = vpop.permute.xlu0 %486
        %489 = vset.pattern.permute.xlu0 1
        %490 = vperm.xlu0 %489, %v255
        %v491 = vpop.permute.xlu0 %490
        %493 = vset.pattern.permute.xlu0 1
        %494 = vperm.xlu0 %493, %v256
        %v495 = vpop.permute.xlu0 %494
        %v497 = vlaneseq
        %v498 = vshrl.u32 %v497, 7
        %v499 = vsub.s32 1, %v498
        %v500 = vrot.slane %v257, %v499
        %v501 = vlaneseq
        %v502 = vshrl.u32 %v501, 7
        %v503 = vsub.s32 3, %v502
        %v504 = vrot.slane %v257, %v503
        %v507 = vlaneseq
        %v508 = vshrl.u32 %v507, 7
        %v509 = vsub.s32 1, %v508
        %v510 = vrot.slane %v500, %v509
        %v511 = vlaneseq
        %v512 = vshrl.u32 %v511, 7
        %v513 = vsub.s32 1, %v512
        %v514 = vrot.slane %v504, %v513
        %v515 = vmul.f32 %v435, %v510
        %v516 = vmul.f32 %v435, %v514
        %v517 = vmul.f32 %v439, %v510
        %v518 = vmul.f32 %v439, %v514
        %v519 = vmul.f32 %v443, %v510
        %v520 = vmul.f32 %v443, %v514
        %v521 = vmul.f32 %v447, %v510
        %v522 = vmul.f32 %v447, %v514
        %v523 = vmul.f32 %v451, %v510
        %v524 = vmul.f32 %v451, %v514
        %v525 = vmul.f32 %v455, %v510
        %v526 = vmul.f32 %v455, %v514
        %v527 = vmul.f32 %v459, %v510
        %v528 = vmul.f32 %v459, %v514
        %v529 = vmul.f32 %v463, %v510
        %v530 = vmul.f32 %v463, %v514
        %v531 = vmul.f32 %v467, %v510
        %v532 = vmul.f32 %v467, %v514
        %v533 = vmul.f32 %v471, %v510
        %v534 = vmul.f32 %v471, %v514
        %v535 = vmul.f32 %v475, %v510
        %v536 = vmul.f32 %v475, %v514
        %v537 = vmul.f32 %v479, %v510
        %v538 = vmul.f32 %v479, %v514
        %v539 = vmul.f32 %v483, %v510
        %v540 = vmul.f32 %v483, %v514
        %v541 = vmul.f32 %v487, %v510
        %v542 = vmul.f32 %v487, %v514
        %v543 = vmul.f32 %v491, %v510
        %v544 = vmul.f32 %v491, %v514
        %v545 = vmul.f32 %v495, %v510
        %v546 = vmul.f32 %v495, %v514
        %v547 = vadd.f32 %v401, %v515
        %v548 = vadd.f32 %v402, %v516
        %v549 = vadd.f32 %v403, %v517
        %v550 = vadd.f32 %v404, %v518
        %v551 = vadd.f32 %v405, %v519
        %v552 = vadd.f32 %v406, %v520
        %v553 = vadd.f32 %v407, %v521
        %v554 = vadd.f32 %v408, %v522
        %v555 = vadd.f32 %v409, %v523
        %v556 = vadd.f32 %v410, %v524
        %v557 = vadd.f32 %v411, %v525
        %v558 = vadd.f32 %v412, %v526
        %v559 = vadd.f32 %v413, %v527
        %v560 = vadd.f32 %v414, %v528
        %v561 = vadd.f32 %v415, %v529
        %v562 = vadd.f32 %v416, %v530
        %v563 = vadd.f32 %v417, %v531
        %v564 = vadd.f32 %v418, %v532
        %v565 = vadd.f32 %v419, %v533
        %v566 = vadd.f32 %v420, %v534
        %v567 = vadd.f32 %v421, %v535
        %v568 = vadd.f32 %v422, %v536
        %v569 = vadd.f32 %v423, %v537
        %v570 = vadd.f32 %v424, %v538
        %v571 = vadd.f32 %v425, %v539
        %v572 = vadd.f32 %v426, %v540
        %v573 = vadd.f32 %v427, %v541
        %v574 = vadd.f32 %v428, %v542
        %v575 = vadd.f32 %v429, %v543
        %v576 = vadd.f32 %v430, %v544
        %v577 = vadd.f32 %v431, %v545
        %v578 = vadd.f32 %v432, %v546
        %v579 = vmax.f32 %v547, 0.0
        %v580 = vmax.f32 %v548, 0.0
        %v581 = vmax.f32 %v549, 0.0
        %v582 = vmax.f32 %v550, 0.0
        %v583 = vmax.f32 %v551, 0.0
        %v584 = vmax.f32 %v552, 0.0
        %v585 = vmax.f32 %v553, 0.0
        %v586 = vmax.f32 %v554, 0.0
        %v587 = vmax.f32 %v555, 0.0
        %v588 = vmax.f32 %v556, 0.0
        %v589 = vmax.f32 %v557, 0.0
        %v590 = vmax.f32 %v558, 0.0
        %v591 = vmax.f32 %v559, 0.0
        %v592 = vmax.f32 %v560, 0.0
        %v593 = vmax.f32 %v561, 0.0
        %v594 = vmax.f32 %v562, 0.0
        %v595 = vmax.f32 %v563, 0.0
        %v596 = vmax.f32 %v564, 0.0
        %v597 = vmax.f32 %v565, 0.0
        %v598 = vmax.f32 %v566, 0.0
        %v599 = vmax.f32 %v567, 0.0
        %v600 = vmax.f32 %v568, 0.0
        %v601 = vmax.f32 %v569, 0.0
        %v602 = vmax.f32 %v570, 0.0
        %v603 = vmax.f32 %v571, 0.0
        %v604 = vmax.f32 %v572, 0.0
        %v605 = vmax.f32 %v573, 0.0
        %v606 = vmax.f32 %v574, 0.0
        %v607 = vmax.f32 %v575, 0.0
        %v608 = vmax.f32 %v576, 0.0
        %v609 = vmax.f32 %v577, 0.0
        %v610 = vmax.f32 %v578, 0.0
        %v611 = vld [vmem:[#allocation2] sm:$0xff]
        %v612 = vld [vmem:[#allocation2 + $0x8] sm:$0xff]
        %v613 = vld [vmem:[#allocation2 + $0x10] sm:$0xff]
        %v614 = vld [vmem:[#allocation2 + $0x18] sm:$0xff]
        %v615 = vld [vmem:[#allocation2 + $0x20] sm:$0xff]
        %v616 = vld [vmem:[#allocation2 + $0x28] sm:$0xff]
        %v617 = vld [vmem:[#allocation2 + $0x30] sm:$0xff]
        %v618 = vld [vmem:[#allocation2 + $0x38] sm:$0xff]
        %v619 = vld [vmem:[#allocation2 + $0x40] sm:$0xff]
        %v620 = vld [vmem:[#allocation2 + $0x48] sm:$0xff]
        %v621 = vld [vmem:[#allocation2 + $0x50] sm:$0xff]
        %v622 = vld [vmem:[#allocation2 + $0x58] sm:$0xff]
        %v623 = vld [vmem:[#allocation2 + $0x60] sm:$0xff]
        %v624 = vld [vmem:[#allocation2 + $0x68] sm:$0xff]
        %v625 = vld [vmem:[#allocation2 + $0x70] sm:$0xff]
        %v626 = vld [vmem:[#allocation2 + $0x78] sm:$0xff]
        %v627 = vld [vmem:[#allocation2 + $0x80] sm:$0xff]
        %v628 = vld [vmem:[#allocation2 + $0x88] sm:$0xff]
        %v629 = vld [vmem:[#allocation2 + $0x90] sm:$0xff]
        %v630 = vld [vmem:[#allocation2 + $0x98] sm:$0xff]
        %v631 = vld [vmem:[#allocation2 + $0xa0] sm:$0xff]
        %v632 = vld [vmem:[#allocation2 + $0xa8] sm:$0xff]
        %v633 = vld [vmem:[#allocation2 + $0xb0] sm:$0xff]
        %v634 = vld [vmem:[#allocation2 + $0xb8] sm:$0xff]
        %v635 = vld [vmem:[#allocation2 + $0xc0] sm:$0xff]
        %v636 = vld [vmem:[#allocation2 + $0xc8] sm:$0xff]
        %v637 = vld [vmem:[#allocation2 + $0xd0] sm:$0xff]
        %v638 = vld [vmem:[#allocation2 + $0xd8] sm:$0xff]
        %v639 = vld [vmem:[#allocation2 + $0xe0] sm:$0xff]
        %v640 = vld [vmem:[#allocation2 + $0xe8] sm:$0xff]
        %v641 = vld [vmem:[#allocation2 + $0xf0] sm:$0xff]
        %v642 = vld [vmem:[#allocation2 + $0xf8] sm:$0xff]
        %v643 = vld [vmem:[#allocation2 + $0x100] sm:$0xff]
        %v644 = vld [vmem:[#allocation2 + $0x108] sm:$0xff]
        %v645 = vld [vmem:[#allocation2 + $0x110] sm:$0xff]
        %v646 = vld [vmem:[#allocation2 + $0x118] sm:$0xff]
        %v647 = vld [vmem:[#allocation2 + $0x120] sm:$0xff]
        %v648 = vld [vmem:[#allocation2 + $0x128] sm:$0xff]
        %v649 = vld [vmem:[#allocation2 + $0x130] sm:$0xff]
        %v650 = vld [vmem:[#allocation2 + $0x138] sm:$0xff]
        %v651 = vld [vmem:[#allocation2 + $0x140] sm:$0xff]
        %v652 = vld [vmem:[#allocation2 + $0x148] sm:$0xff]
        %v653 = vld [vmem:[#allocation2 + $0x150] sm:$0xff]
        %v654 = vld [vmem:[#allocation2 + $0x158] sm:$0xff]
        %v655 = vld [vmem:[#allocation2 + $0x160] sm:$0xff]
        %v656 = vld [vmem:[#allocation2 + $0x168] sm:$0xff]
        %v657 = vld [vmem:[#allocation2 + $0x170] sm:$0xff]
        %v658 = vld [vmem:[#allocation2 + $0x178] sm:$0xff]
        %v659 = vld [vmem:[#allocation2 + $0x180] sm:$0xff]
        %v660 = vld [vmem:[#allocation2 + $0x188] sm:$0xff]
        %v661 = vld [vmem:[#allocation2 + $0x190] sm:$0xff]
        %v662 = vld [vmem:[#allocation2 + $0x198] sm:$0xff]
        %v663 = vld [vmem:[#allocation2 + $0x1a0] sm:$0xff]
        %v664 = vld [vmem:[#allocation2 + $0x1a8] sm:$0xff]
        %v665 = vld [vmem:[#allocation2 + $0x1b0] sm:$0xff]
        %v666 = vld [vmem:[#allocation2 + $0x1b8] sm:$0xff]
        %v667 = vld [vmem:[#allocation2 + $0x1c0] sm:$0xff]
        %v668 = vld [vmem:[#allocation2 + $0x1c8] sm:$0xff]
        %v669 = vld [vmem:[#allocation2 + $0x1d0] sm:$0xff]
        %v670 = vld [vmem:[#allocation2 + $0x1d8] sm:$0xff]
        %v671 = vld [vmem:[#allocation2 + $0x1e0] sm:$0xff]
        %v672 = vld [vmem:[#allocation2 + $0x1e8] sm:$0xff]
        %v673 = vld [vmem:[#allocation2 + $0x1f0] sm:$0xff]
        %v674 = vld [vmem:[#allocation2 + $0x1f8] sm:$0xff]
        %v675 = vld [vmem:[#allocation2 + $0x200] sm:$0xff]
        %v676 = vld [vmem:[#allocation2 + $0x208] sm:$0xff]
        %v677 = vld [vmem:[#allocation2 + $0x210] sm:$0xff]
        %v678 = vld [vmem:[#allocation2 + $0x218] sm:$0xff]
        %v679 = vld [vmem:[#allocation2 + $0x220] sm:$0xff]
        %v680 = vld [vmem:[#allocation2 + $0x228] sm:$0xff]
        %v681 = vld [vmem:[#allocation2 + $0x230] sm:$0xff]
        %v682 = vld [vmem:[#allocation2 + $0x238] sm:$0xff]
        %v683 = vld [vmem:[#allocation2 + $0x240] sm:$0xff]
        %v684 = vld [vmem:[#allocation2 + $0x248] sm:$0xff]
        %v685 = vld [vmem:[#allocation2 + $0x250] sm:$0xff]
        %v686 = vld [vmem:[#allocation2 + $0x258] sm:$0xff]
        %v687 = vld [vmem:[#allocation2 + $0x260] sm:$0xff]
        %v688 = vld [vmem:[#allocation2 + $0x268] sm:$0xff]
        %v689 = vld [vmem:[#allocation2 + $0x270] sm:$0xff]
        %v690 = vld [vmem:[#allocation2 + $0x278] sm:$0xff]
        %v691 = vld [vmem:[#allocation2 + $0x280] sm:$0xff]
        %v692 = vld [vmem:[#allocation2 + $0x288] sm:$0xff]
        %v693 = vld [vmem:[#allocation2 + $0x290] sm:$0xff]
        %v694 = vld [vmem:[#allocation2 + $0x298] sm:$0xff]
        %v695 = vld [vmem:[#allocation2 + $0x2a0] sm:$0xff]
        %v696 = vld [vmem:[#allocation2 + $0x2a8] sm:$0xff]
        %v697 = vld [vmem:[#allocation2 + $0x2b0] sm:$0xff]
        %v698 = vld [vmem:[#allocation2 + $0x2b8] sm:$0xff]
        %v699 = vld [vmem:[#allocation2 + $0x2c0] sm:$0xff]
        %v700 = vld [vmem:[#allocation2 + $0x2c8] sm:$0xff]
        %v701 = vld [vmem:[#allocation2 + $0x2d0] sm:$0xff]
        %v702 = vld [vmem:[#allocation2 + $0x2d8] sm:$0xff]
        %v703 = vld [vmem:[#allocation2 + $0x2e0] sm:$0xff]
        %v704 = vld [vmem:[#allocation2 + $0x2e8] sm:$0xff]
        %v705 = vld [vmem:[#allocation2 + $0x2f0] sm:$0xff]
        %v706 = vld [vmem:[#allocation2 + $0x2f8] sm:$0xff]
        %v707 = vld [vmem:[#allocation2 + $0x300] sm:$0xff]
        %v708 = vld [vmem:[#allocation2 + $0x308] sm:$0xff]
        %v709 = vld [vmem:[#allocation2 + $0x310] sm:$0xff]
        %v710 = vld [vmem:[#allocation2 + $0x318] sm:$0xff]
        %v711 = vld [vmem:[#allocation2 + $0x320] sm:$0xff]
        %v712 = vld [vmem:[#allocation2 + $0x328] sm:$0xff]
        %v713 = vld [vmem:[#allocation2 + $0x330] sm:$0xff]
        %v714 = vld [vmem:[#allocation2 + $0x338] sm:$0xff]
        %v715 = vld [vmem:[#allocation2 + $0x340] sm:$0xff]
        %v716 = vld [vmem:[#allocation2 + $0x348] sm:$0xff]
        %v717 = vld [vmem:[#allocation2 + $0x350] sm:$0xff]
        %v718 = vld [vmem:[#allocation2 + $0x358] sm:$0xff]
        %v719 = vld [vmem:[#allocation2 + $0x360] sm:$0xff]
        %v720 = vld [vmem:[#allocation2 + $0x368] sm:$0xff]
        %v721 = vld [vmem:[#allocation2 + $0x370] sm:$0xff]
        %v722 = vld [vmem:[#allocation2 + $0x378] sm:$0xff]
        %v723 = vld [vmem:[#allocation2 + $0x380] sm:$0xff]
        %v724 = vld [vmem:[#allocation2 + $0x388] sm:$0xff]
        %v725 = vld [vmem:[#allocation2 + $0x390] sm:$0xff]
        %v726 = vld [vmem:[#allocation2 + $0x398] sm:$0xff]
        %v727 = vld [vmem:[#allocation2 + $0x3a0] sm:$0xff]
        %v728 = vld [vmem:[#allocation2 + $0x3a8] sm:$0xff]
        %v729 = vld [vmem:[#allocation2 + $0x3b0] sm:$0xff]
        %v730 = vld [vmem:[#allocation2 + $0x3b8] sm:$0xff]
        %v731 = vld [vmem:[#allocation2 + $0x3c0] sm:$0xff]
        %v732 = vld [vmem:[#allocation2 + $0x3c8] sm:$0xff]
        %v733 = vld [vmem:[#allocation2 + $0x3d0] sm:$0xff]
        %v734 = vld [vmem:[#allocation2 + $0x3d8] sm:$0xff]
        %v735 = vld [vmem:[#allocation2 + $0x3e0] sm:$0xff]
        %v736 = vld [vmem:[#allocation2 + $0x3e8] sm:$0xff]
        %v737 = vld [vmem:[#allocation2 + $0x3f0] sm:$0xff]
        %v738 = vld [vmem:[#allocation2 + $0x3f8] sm:$0xff]
        %v739 = vld [vmem:[#allocation2 + $0x400] sm:$0xff]
        %v740 = vld [vmem:[#allocation2 + $0x408] sm:$0xff]
        %v741 = vld [vmem:[#allocation2 + $0x410] sm:$0xff]
        %v742 = vld [vmem:[#allocation2 + $0x418] sm:$0xff]
        %v743 = vld [vmem:[#allocation2 + $0x420] sm:$0xff]
        %v744 = vld [vmem:[#allocation2 + $0x428] sm:$0xff]
        %v745 = vld [vmem:[#allocation2 + $0x430] sm:$0xff]
        %v746 = vld [vmem:[#allocation2 + $0x438] sm:$0xff]
        %v747 = vld [vmem:[#allocation2 + $0x440] sm:$0xff]
        %v748 = vld [vmem:[#allocation2 + $0x448] sm:$0xff]
        %v749 = vld [vmem:[#allocation2 + $0x450] sm:$0xff]
        %v750 = vld [vmem:[#allocation2 + $0x458] sm:$0xff]
        %v751 = vld [vmem:[#allocation2 + $0x460] sm:$0xff]
        %v752 = vld [vmem:[#allocation2 + $0x468] sm:$0xff]
        %v753 = vld [vmem:[#allocation2 + $0x470] sm:$0xff]
        %v754 = vld [vmem:[#allocation2 + $0x478] sm:$0xff]
        %v755 = vld [vmem:[#allocation2 + $0x480] sm:$0xff]
        %v756 = vld [vmem:[#allocation2 + $0x488] sm:$0xff]
        %v757 = vld [vmem:[#allocation2 + $0x490] sm:$0xff]
        %v758 = vld [vmem:[#allocation2 + $0x498] sm:$0xff]
        %v759 = vld [vmem:[#allocation2 + $0x4a0] sm:$0xff]
        %v760 = vld [vmem:[#allocation2 + $0x4a8] sm:$0xff]
        %v761 = vld [vmem:[#allocation2 + $0x4b0] sm:$0xff]
        %v762 = vld [vmem:[#allocation2 + $0x4b8] sm:$0xff]
        %v763 = vld [vmem:[#allocation2 + $0x4c0] sm:$0xff]
        %v764 = vld [vmem:[#allocation2 + $0x4c8] sm:$0xff]
        %v765 = vld [vmem:[#allocation2 + $0x4d0] sm:$0xff]
        %v766 = vld [vmem:[#allocation2 + $0x4d8] sm:$0xff]
        %v767 = vld [vmem:[#allocation2 + $0x4e0] sm:$0xff]
        %v768 = vld [vmem:[#allocation2 + $0x4e8] sm:$0xff]
        %v769 = vld [vmem:[#allocation2 + $0x4f0] sm:$0xff]
        %v770 = vld [vmem:[#allocation2 + $0x4f8] sm:$0xff]
        %v771 = vld [vmem:[#allocation2 + $0x500] sm:$0xff]
        %v772 = vld [vmem:[#allocation2 + $0x508] sm:$0xff]
        %v773 = vld [vmem:[#allocation2 + $0x510] sm:$0xff]
        %v774 = vld [vmem:[#allocation2 + $0x518] sm:$0xff]
        %v775 = vld [vmem:[#allocation2 + $0x520] sm:$0xff]
        %v776 = vld [vmem:[#allocation2 + $0x528] sm:$0xff]
        %v777 = vld [vmem:[#allocation2 + $0x530] sm:$0xff]
        %v778 = vld [vmem:[#allocation2 + $0x538] sm:$0xff]
        %v779 = vld [vmem:[#allocation2 + $0x540] sm:$0xff]
        %v780 = vld [vmem:[#allocation2 + $0x548] sm:$0xff]
        %v781 = vld [vmem:[#allocation2 + $0x550] sm:$0xff]
        %v782 = vld [vmem:[#allocation2 + $0x558] sm:$0xff]
        %v783 = vld [vmem:[#allocation2 + $0x560] sm:$0xff]
        %v784 = vld [vmem:[#allocation2 + $0x568] sm:$0xff]
        %v785 = vld [vmem:[#allocation2 + $0x570] sm:$0xff]
        %v786 = vld [vmem:[#allocation2 + $0x578] sm:$0xff]
        %v787 = vld [vmem:[#allocation2 + $0x580] sm:$0xff]
        %v788 = vld [vmem:[#allocation2 + $0x588] sm:$0xff]
        %v789 = vld [vmem:[#allocation2 + $0x590] sm:$0xff]
        %v790 = vld [vmem:[#allocation2 + $0x598] sm:$0xff]
        %v791 = vld [vmem:[#allocation2 + $0x5a0] sm:$0xff]
        %v792 = vld [vmem:[#allocation2 + $0x5a8] sm:$0xff]
        %v793 = vld [vmem:[#allocation2 + $0x5b0] sm:$0xff]
        %v794 = vld [vmem:[#allocation2 + $0x5b8] sm:$0xff]
        %v795 = vld [vmem:[#allocation2 + $0x5c0] sm:$0xff]
        %v796 = vld [vmem:[#allocation2 + $0x5c8] sm:$0xff]
        %v797 = vld [vmem:[#allocation2 + $0x5d0] sm:$0xff]
        %v798 = vld [vmem:[#allocation2 + $0x5d8] sm:$0xff]
        %v799 = vld [vmem:[#allocation2 + $0x5e0] sm:$0xff]
        %v800 = vld [vmem:[#allocation2 + $0x5e8] sm:$0xff]
        %v801 = vld [vmem:[#allocation2 + $0x5f0] sm:$0xff]
        %v802 = vld [vmem:[#allocation2 + $0x5f8] sm:$0xff]
        %v803 = vld [vmem:[#allocation2 + $0x600] sm:$0xff]
        %v804 = vld [vmem:[#allocation2 + $0x608] sm:$0xff]
        %v805 = vld [vmem:[#allocation2 + $0x610] sm:$0xff]
        %v806 = vld [vmem:[#allocation2 + $0x618] sm:$0xff]
        %v807 = vld [vmem:[#allocation2 + $0x620] sm:$0xff]
        %v808 = vld [vmem:[#allocation2 + $0x628] sm:$0xff]
        %v809 = vld [vmem:[#allocation2 + $0x630] sm:$0xff]
        %v810 = vld [vmem:[#allocation2 + $0x638] sm:$0xff]
        %v811 = vld [vmem:[#allocation2 + $0x640] sm:$0xff]
        %v812 = vld [vmem:[#allocation2 + $0x648] sm:$0xff]
        %v813 = vld [vmem:[#allocation2 + $0x650] sm:$0xff]
        %v814 = vld [vmem:[#allocation2 + $0x658] sm:$0xff]
        %v815 = vld [vmem:[#allocation2 + $0x660] sm:$0xff]
        %v816 = vld [vmem:[#allocation2 + $0x668] sm:$0xff]
        %v817 = vld [vmem:[#allocation2 + $0x670] sm:$0xff]
        %v818 = vld [vmem:[#allocation2 + $0x678] sm:$0xff]
        %v819 = vld [vmem:[#allocation2 + $0x680] sm:$0xff]
        %v820 = vld [vmem:[#allocation2 + $0x688] sm:$0xff]
        %v821 = vld [vmem:[#allocation2 + $0x690] sm:$0xff]
        %v822 = vld [vmem:[#allocation2 + $0x698] sm:$0xff]
        %v823 = vld [vmem:[#allocation2 + $0x6a0] sm:$0xff]
        %v824 = vld [vmem:[#allocation2 + $0x6a8] sm:$0xff]
        %v825 = vld [vmem:[#allocation2 + $0x6b0] sm:$0xff]
        %v826 = vld [vmem:[#allocation2 + $0x6b8] sm:$0xff]
        %v827 = vld [vmem:[#allocation2 + $0x6c0] sm:$0xff]
        %v828 = vld [vmem:[#allocation2 + $0x6c8] sm:$0xff]
        %v829 = vld [vmem:[#allocation2 + $0x6d0] sm:$0xff]
        %v830 = vld [vmem:[#allocation2 + $0x6d8] sm:$0xff]
        %v831 = vld [vmem:[#allocation2 + $0x6e0] sm:$0xff]
        %v832 = vld [vmem:[#allocation2 + $0x6e8] sm:$0xff]
        %v833 = vld [vmem:[#allocation2 + $0x6f0] sm:$0xff]
        %v834 = vld [vmem:[#allocation2 + $0x6f8] sm:$0xff]
        %v835 = vld [vmem:[%s4] sm:$0xff]
        %v837 = vlaneseq
        %v838 = vshrl.u32 %v837, 7
        %v839 = vsub.s32 0, %v838
        %v840 = vrot.slane %v835, %v839
        %v841 = vlaneseq
        %v842 = vshrl.u32 %v841, 7
        %v843 = vsub.s32 1, %v842
        %v844 = vrot.slane %v835, %v843
        %v845 = vlaneseq
        %v846 = vshrl.u32 %v845, 7
        %v847 = vsub.s32 2, %v846
        %v848 = vrot.slane %v835, %v847
        %v849 = vlaneseq
        %v850 = vshrl.u32 %v849, 7
        %v851 = vsub.s32 3, %v850
        %v852 = vrot.slane %v835, %v851
        %v853 = vlaneseq
        %v854 = vshrl.u32 %v853, 7
        %v855 = vsub.s32 4, %v854
        %v856 = vrot.slane %v835, %v855
        %v857 = vlaneseq
        %v858 = vshrl.u32 %v857, 7
        %v859 = vsub.s32 5, %v858
        %v860 = vrot.slane %v835, %v859
        %v861 = vlaneseq
        %v862 = vshrl.u32 %v861, 7
        %v863 = vsub.s32 6, %v862
        %v864 = vrot.slane %v835, %v863
        %872 = vmatprep.subr.mxu0 %v612
        %873 = vmatpush1.msra.mxu0 %v611
        %874 = vmatprep.subr.mxu0 %v619
        %875 = vmatpush1.msra.mxu0 %v618
        %876 = vmatprep.subr.mxu0 %v626
        %877 = vmatpush1.msra.mxu0 %v625
        %878 = vmatprep.subr.mxu0 %v633
        %879 = vmatpush1.msra.mxu0 %v632
        %880 = vmatprep.subr.mxu0 %v640
        %881 = vmatpush1.msra.mxu0 %v639
        %882 = vmatprep.subr.mxu0 %v647
        %883 = vmatpush1.msra.mxu0 %v646
        %884 = vmatprep.subr.mxu0 %v654
        %885 = vmatpush1.msra.mxu0 %v653
        %886 = vmatprep.subr.mxu0 %v661
        %887 = vmatpush1.msra.mxu0 %v660
        %888 = vmatprep.subr.mxu0 %v668
        %889 = vmatpush1.msra.mxu0 %v667
        %890 = vmatprep.subr.mxu0 %v675
        %891 = vmatpush1.msra.mxu0 %v674
        %892 = vmatprep.subr.mxu0 %v682
        %893 = vmatpush1.msra.mxu0 %v681
        %894 = vmatprep.subr.mxu0 %v689
        %895 = vmatpush1.msra.mxu0 %v688
        %896 = vmatprep.subr.mxu0 %v696
        %897 = vmatpush1.msra.mxu0 %v695
        %898 = vmatprep.subr.mxu0 %v703
        %899 = vmatpush1.msra.mxu0 %v702
        %900 = vmatprep.subr.mxu0 %v710
        %901 = vmatpush1.msra.mxu0 %v709
        %902 = vmatprep.subr.mxu0 %v717
        %903 = vmatpush1.msra.mxu0 %v716
        %904 = vmatprep.subr.mxu0 %v724
        %905 = vmatpush1.msra.mxu0 %v723
        %906 = vmatprep.subr.mxu0 %v731
        %907 = vmatpush1.msra.mxu0 %v730
        %908 = vmatprep.subr.mxu0 %v738
        %909 = vmatpush1.msra.mxu0 %v737
        %910 = vmatprep.subr.mxu0 %v745
        %911 = vmatpush1.msra.mxu0 %v744
        %912 = vmatprep.subr.mxu0 %v752
        %913 = vmatpush1.msra.mxu0 %v751
        %914 = vmatprep.subr.mxu0 %v759
        %915 = vmatpush1.msra.mxu0 %v758
        %916 = vmatprep.subr.mxu0 %v766
        %917 = vmatpush1.msra.mxu0 %v765
        %918 = vmatprep.subr.mxu0 %v773
        %919 = vmatpush1.msra.mxu0 %v772
        %920 = vmatprep.subr.mxu0 %v780
        %921 = vmatpush1.msra.mxu0 %v779
        %922 = vmatprep.subr.mxu0 %v787
        %923 = vmatpush1.msra.mxu0 %v786
        %924 = vmatprep.subr.mxu0 %v794
        %925 = vmatpush1.msra.mxu0 %v793
        %926 = vmatprep.subr.mxu0 %v801
        %927 = vmatpush1.msra.mxu0 %v800
        %928 = vmatprep.subr.mxu0 %v808
        %929 = vmatpush1.msra.mxu0 %v807
        %930 = vmatprep.subr.mxu0 %v815
        %931 = vmatpush1.msra.mxu0 %v814
        %932 = vmatprep.subr.mxu0 %v822
        %933 = vmatpush1.msra.mxu0 %v821
        %934 = vmatprep.subr.mxu0 %v829
        %935 = vmatpush1.msra.mxu0 %v828
        %936 = vmatprep.mubr.f32.mxu0 %v580
        %937 = vmatmul.mubr.f32.gmra.mrb[0].mxu0 %v579
        %v938 = vpop.f32.mrb[0].mxu0
        %v939 = vadd.f32 %v840, %v938
        %v940 = vpop.f32.mrb[0].mxu0
        %v941 = vadd.f32 %v844, %v940
        %942 = vmatprep.mubr.f32.mxu0 %v582
        %943 = vmatmul.mubr.f32.gmra.mrb[0].mxu0 %v581
        %v944 = vpop.f32.mrb[0].mxu0
        %v945 = vadd.f32 %v840, %v944
        %v946 = vpop.f32.mrb[0].mxu0
        %v947 = vadd.f32 %v844, %v946
        %948 = vmatprep.mubr.f32.mxu0 %v584
        %949 = vmatmul.mubr.f32.gmra.mrb[0].mxu0 %v583
        %v950 = vpop.f32.mrb[0].mxu0
        %v951 = vadd.f32 %v840, %v950
        %v952 = vpop.f32.mrb[0].mxu0
        %v953 = vadd.f32 %v844, %v952
        %954 = vmatprep.mubr.f32.mxu0 %v586
        %955 = vmatmul.mubr.f32.gmra.mrb[0].mxu0 %v585
        %v956 = vpop.f32.mrb[0].mxu0
        %v957 = vadd.f32 %v840, %v956
        %v958 = vpop.f32.mrb[0].mxu0
        %v959 = vadd.f32 %v844, %v958
        %960 = vmatprep.mubr.f32.mxu0 %v588
        %961 = vmatmul.mubr.f32.gmra.mrb[0].mxu0 %v587
        %v962 = vpop.f32.mrb[0].mxu0
        %v963 = vadd.f32 %v840, %v962
        %v964 = vpop.f32.mrb[0].mxu0
        %v965 = vadd.f32 %v844, %v964
        %966 = vmatprep.mubr.f32.mxu0 %v590
        %967 = vmatmul.mubr.f32.gmra.mrb[0].mxu0 %v589
        %v968 = vpop.f32.mrb[0].mxu0
        %v969 = vadd.f32 %v840, %v968
        %v970 = vpop.f32.mrb[0].mxu0
        %v971 = vadd.f32 %v844, %v970
        %972 = vmatprep.mubr.f32.mxu0 %v592
        %973 = vmatmul.mubr.f32.gmra.mrb[0].mxu0 %v591
        %v974 = vpop.f32.mrb[0].mxu0
        %v975 = vadd.f32 %v840, %v974
        %v976 = vpop.f32.mrb[0].mxu0
        %v977 = vadd.f32 %v844, %v976
        %978 = vmatprep.mubr.f32.mxu0 %v594
        %979 = vmatmul.mubr.f32.gmra.mrb[0].mxu0 %v593
        %v980 = vpop.f32.mrb[0].mxu0
        %v981 = vadd.f32 %v840, %v980
        %v982 = vpop.f32.mrb[0].mxu0
        %v983 = vadd.f32 %v844, %v982
        %984 = vmatprep.mubr.f32.mxu0 %v596
        %985 = vmatmul.mubr.f32.gmra.mrb[0].mxu0 %v595
        %v986 = vpop.f32.mrb[0].mxu0
        %v987 = vadd.f32 %v840, %v986
        %v988 = vpop.f32.mrb[0].mxu0
        %v989 = vadd.f32 %v844, %v988
        %990 = vmatprep.mubr.f32.mxu0 %v598
        %991 = vmatmul.mubr.f32.gmra.mrb[0].mxu0 %v597
        %v992 = vpop.f32.mrb[0].mxu0
        %v993 = vadd.f32 %v840, %v992
        %v994 = vpop.f32.mrb[0].mxu0
        %v995 = vadd.f32 %v844, %v994
        %996 = vmatprep.mubr.f32.mxu0 %v600
        %997 = vmatmul.mubr.f32.gmra.mrb[0].mxu0 %v599
        %v998 = vpop.f32.mrb[0].mxu0
        %v999 = vadd.f32 %v840, %v998
        %v1000 = vpop.f32.mrb[0].mxu0
        %v1001 = vadd.f32 %v844, %v1000
        %1002 = vmatprep.mubr.f32.mxu0 %v602
        %1003 = vmatmul.mubr.f32.gmra.mrb[0].mxu0 %v601
        %v1004 = vpop.f32.mrb[0].mxu0
        %v1005 = vadd.f32 %v840, %v1004
        %v1006 = vpop.f32.mrb[0].mxu0
        %v1007 = vadd.f32 %v844, %v1006
        %1008 = vmatprep.mubr.f32.mxu0 %v604
        %1009 = vmatmul.mubr.f32.gmra.mrb[0].mxu0 %v603
        %v1010 = vpop.f32.mrb[0].mxu0
        %v1011 = vadd.f32 %v840, %v1010
        %v1012 = vpop.f32.mrb[0].mxu0
        %v1013 = vadd.f32 %v844, %v1012
        %1014 = vmatprep.mubr.f32.mxu0 %v606
        %1015 = vmatmul.mubr.f32.gmra.mrb[0].mxu0 %v605
        %v1016 = vpop.f32.mrb[0].mxu0
        %v1017 = vadd.f32 %v840, %v1016
        %v1018 = vpop.f32.mrb[0].mxu0
        %v1019 = vadd.f32 %v844, %v1018
        %1020 = vmatprep.mubr.f32.mxu0 %v608
        %1021 = vmatmul.mubr.f32.gmra.mrb[0].mxu0 %v607
        %v1022 = vpop.f32.mrb[0].mxu0
        %v1023 = vadd.f32 %v840, %v1022
        %v1024 = vpop.f32.mrb[0].mxu0
        %v1025 = vadd.f32 %v844, %v1024
        %1026 = vmatprep.mubr.f32.mxu0 %v610
        %1027 = vmatmul.mubr.f32.gmra.mrb[0].mxu0 %v609
        %v1028 = vpop.f32.mrb[0].mxu0
        %v1029 = vadd.f32 %v840, %v1028
        %v1030 = vpop.f32.mrb[0].mxu0
        %v1031 = vadd.f32 %v844, %v1030
        %1032 = vdwg.mxu0
        %1033 = vmatprep.subr.mxu0 %v614
        %1034 = vmatpush1.msra.mxu0 %v613
        %1035 = vmatprep.subr.mxu0 %v621
        %1036 = vmatpush1.msra.mxu0 %v620
        %1037 = vmatprep.subr.mxu0 %v628
        %1038 = vmatpush1.msra.mxu0 %v627
        %1039 = vmatprep.subr.mxu0 %v635
        %1040 = vmatpush1.msra.mxu0 %v634
        %1041 = vmatprep.subr.mxu0 %v642
        %1042 = vmatpush1.msra.mxu0 %v641
        %1043 = vmatprep.subr.mxu0 %v649
        %1044 = vmatpush1.msra.mxu0 %v648
        %1045 = vmatprep.subr.mxu0 %v656
        %1046 = vmatpush1.msra.mxu0 %v655
        %1047 = vmatprep.subr.mxu0 %v663
        %1048 = vmatpush1.msra.mxu0 %v662
        %1049 = vmatprep.subr.mxu0 %v670
        %1050 = vmatpush1.msra.mxu0 %v669
        %1051 = vmatprep.subr.mxu0 %v677
        %1052 = vmatpush1.msra.mxu0 %v676
        %1053 = vmatprep.subr.mxu0 %v684
        %1054 = vmatpush1.msra.mxu0 %v683
        %1055 = vmatprep.subr.mxu0 %v691
        %1056 = vmatpush1.msra.mxu0 %v690
        %1057 = vmatprep.subr.mxu0 %v698
        %1058 = vmatpush1.msra.mxu0 %v697
        %1059 = vmatprep.subr.mxu0 %v705
        %1060 = vmatpush1.msra.mxu0 %v704
        %1061 = vmatprep.subr.mxu0 %v712
        %1062 = vmatpush1.msra.mxu0 %v711
        %1063 = vmatprep.subr.mxu0 %v719
        %1064 = vmatpush1.msra.mxu0 %v718
        %1065 = vmatprep.subr.mxu0 %v726
        %1066 = vmatpush1.msra.mxu0 %v725
        %1067 = vmatprep.subr.mxu0 %v733
        %1068 = vmatpush1.msra.mxu0 %v732
        %1069 = vmatprep.subr.mxu0 %v740
        %1070 = vmatpush1.msra.mxu0 %v739
        %1071 = vmatprep.subr.mxu0 %v747
        %1072 = vmatpush1.msra.mxu0 %v746
        %1073 = vmatprep.subr.mxu0 %v754
        %1074 = vmatpush1.msra.mxu0 %v753
        %1075 = vmatprep.subr.mxu0 %v761
        %1076 = vmatpush1.msra.mxu0 %v760
        %1077 = vmatprep.subr.mxu0 %v768
        %1078 = vmatpush1.msra.mxu0 %v767
        %1079 = vmatprep.subr.mxu0 %v775
        %1080 = vmatpush1.msra.mxu0 %v774
        %1081 = vmatprep.subr.mxu0 %v782
        %1082 = vmatpush1.msra.mxu0 %v781
        %1083 = vmatprep.subr.mxu0 %v789
        %1084 = vmatpush1.msra.mxu0 %v788
        %1085 = vmatprep.subr.mxu0 %v796
        %1086 = vmatpush1.msra.mxu0 %v795
        %1087 = vmatprep.subr.mxu0 %v803
        %1088 = vmatpush1.msra.mxu0 %v802
        %1089 = vmatprep.subr.mxu0 %v810
        %1090 = vmatpush1.msra.mxu0 %v809
        %1091 = vmatprep.subr.mxu0 %v817
        %1092 = vmatpush1.msra.mxu0 %v816
        %1093 = vmatprep.subr.mxu0 %v824
        %1094 = vmatpush1.msra.mxu0 %v823
        %1095 = vmatprep.subr.mxu0 %v831
        %1096 = vmatpush1.msra.mxu0 %v830
        %1097 = vmatprep.mubr.f32.mxu0 %v580
        %1098 = vmatmul.mubr.f32.gmra.mrb[0].mxu0 %v579
        %v1099 = vpop.f32.mrb[0].mxu0
        %v1100 = vadd.f32 %v848, %v1099
        %v1101 = vpop.f32.mrb[0].mxu0
        %v1102 = vadd.f32 %v852, %v1101
        %1103 = vmatprep.mubr.f32.mxu0 %v582
        %1104 = vmatmul.mubr.f32.gmra.mrb[0].mxu0 %v581
        %v1105 = vpop.f32.mrb[0].mxu0
        %v1106 = vadd.f32 %v848, %v1105
        %v1107 = vpop.f32.mrb[0].mxu0
        %v1108 = vadd.f32 %v852, %v1107
        %1109 = vmatprep.mubr.f32.mxu0 %v584
        %1110 = vmatmul.mubr.f32.gmra.mrb[0].mxu0 %v583
        %v1111 = vpop.f32.mrb[0].mxu0
        %v1112 = vadd.f32 %v848, %v1111
        %v1113 = vpop.f32.mrb[0].mxu0
        %v1114 = vadd.f32 %v852, %v1113
        %1115 = vmatprep.mubr.f32.mxu0 %v586
        %1116 = vmatmul.mubr.f32.gmra.mrb[0].mxu0 %v585
        %v1117 = vpop.f32.mrb[0].mxu0
        %v1118 = vadd.f32 %v848, %v1117
        %v1119 = vpop.f32.mrb[0].mxu0
        %v1120 = vadd.f32 %v852, %v1119
        %1121 = vmatprep.mubr.f32.mxu0 %v588
        %1122 = vmatmul.mubr.f32.gmra.mrb[0].mxu0 %v587
        %v1123 = vpop.f32.mrb[0].mxu0
        %v1124 = vadd.f32 %v848, %v1123
        %v1125 = vpop.f32.mrb[0].mxu0
        %v1126 = vadd.f32 %v852, %v1125
        %1127 = vmatprep.mubr.f32.mxu0 %v590
        %1128 = vmatmul.mubr.f32.gmra.mrb[0].mxu0 %v589
        %v1129 = vpop.f32.mrb[0].mxu0
        %v1130 = vadd.f32 %v848, %v1129
        %v1131 = vpop.f32.mrb[0].mxu0
        %v1132 = vadd.f32 %v852, %v1131
        %1133 = vmatprep.mubr.f32.mxu0 %v592
        %1134 = vmatmul.mubr.f32.gmra.mrb[0].mxu0 %v591
        %v1135 = vpop.f32.mrb[0].mxu0
        %v1136 = vadd.f32 %v848, %v1135
        %v1137 = vpop.f32.mrb[0].mxu0
        %v1138 = vadd.f32 %v852, %v1137
        %1139 = vmatprep.mubr.f32.mxu0 %v594
        %1140 = vmatmul.mubr.f32.gmra.mrb[0].mxu0 %v593
        %v1141 = vpop.f32.mrb[0].mxu0
        %v1142 = vadd.f32 %v848, %v1141
        %v1143 = vpop.f32.mrb[0].mxu0
        %v1144 = vadd.f32 %v852, %v1143
        %1145 = vmatprep.mubr.f32.mxu0 %v596
        %1146 = vmatmul.mubr.f32.gmra.mrb[0].mxu0 %v595
        %v1147 = vpop.f32.mrb[0].mxu0
        %v1148 = vadd.f32 %v848, %v1147
        %v1149 = vpop.f32.mrb[0].mxu0
        %v1150 = vadd.f32 %v852, %v1149
        %1151 = vmatprep.mubr.f32.mxu0 %v598
        %1152 = vmatmul.mubr.f32.gmra.mrb[0].mxu0 %v597
        %v1153 = vpop.f32.mrb[0].mxu0
        %v1154 = vadd.f32 %v848, %v1153
        %v1155 = vpop.f32.mrb[0].mxu0
        %v1156 = vadd.f32 %v852, %v1155
        %1157 = vmatprep.mubr.f32.mxu0 %v600
        %1158 = vmatmul.mubr.f32.gmra.mrb[0].mxu0 %v599
        %v1159 = vpop.f32.mrb[0].mxu0
        %v1160 = vadd.f32 %v848, %v1159
        %v1161 = vpop.f32.mrb[0].mxu0
        %v1162 = vadd.f32 %v852, %v1161
        %1163 = vmatprep.mubr.f32.mxu0 %v602
        %1164 = vmatmul.mubr.f32.gmra.mrb[0].mxu0 %v601
        %v1165 = vpop.f32.mrb[0].mxu0
        %v1166 = vadd.f32 %v848, %v1165
        %v1167 = vpop.f32.mrb[0].mxu0
        %v1168 = vadd.f32 %v852, %v1167
        %1169 = vmatprep.mubr.f32.mxu0 %v604
        %1170 = vmatmul.mubr.f32.gmra.mrb[0].mxu0 %v603
        %v1171 = vpop.f32.mrb[0].mxu0
        %v1172 = vadd.f32 %v848, %v1171
        %v1173 = vpop.f32.mrb[0].mxu0
        %v1174 = vadd.f32 %v852, %v1173
        %1175 = vmatprep.mubr.f32.mxu0 %v606
        %1176 = vmatmul.mubr.f32.gmra.mrb[0].mxu0 %v605
        %v1177 = vpop.f32.mrb[0].mxu0
        %v1178 = vadd.f32 %v848, %v1177
        %v1179 = vpop.f32.mrb[0].mxu0
        %v1180 = vadd.f32 %v852, %v1179
        %1181 = vmatprep.mubr.f32.mxu0 %v608
        %1182 = vmatmul.mubr.f32.gmra.mrb[0].mxu0 %v607
        %v1183 = vpop.f32.mrb[0].mxu0
        %v1184 = vadd.f32 %v848, %v1183
        %v1185 = vpop.f32.mrb[0].mxu0
        %v1186 = vadd.f32 %v852, %v1185
        %1187 = vmatprep.mubr.f32.mxu0 %v610
        %1188 = vmatmul.mubr.f32.gmra.mrb[0].mxu0 %v609
        %v1189 = vpop.f32.mrb[0].mxu0
        %v1190 = vadd.f32 %v848, %v1189
        %v1191 = vpop.f32.mrb[0].mxu0
        %v1192 = vadd.f32 %v852, %v1191
        %1193 = vdwg.mxu0
        %1194 = vmatprep.subr.mxu0 %v616
        %1195 = vmatpush1.msra.mxu0 %v615
        %1196 = vmatprep.subr.mxu0 %v623
        %1197 = vmatpush1.msra.mxu0 %v622
        %1198 = vmatprep.subr.mxu0 %v630
        %1199 = vmatpush1.msra.mxu0 %v629
        %1200 = vmatprep.subr.mxu0 %v637
        %1201 = vmatpush1.msra.mxu0 %v636
        %1202 = vmatprep.subr.mxu0 %v644
        %1203 = vmatpush1.msra.mxu0 %v643
        %1204 = vmatprep.subr.mxu0 %v651
        %1205 = vmatpush1.msra.mxu0 %v650
        %1206 = vmatprep.subr.mxu0 %v658
        %1207 = vmatpush1.msra.mxu0 %v657
        %1208 = vmatprep.subr.mxu0 %v665
        %1209 = vmatpush1.msra.mxu0 %v664
        %1210 = vmatprep.subr.mxu0 %v672
        %1211 = vmatpush1.msra.mxu0 %v671
        %1212 = vmatprep.subr.mxu0 %v679
        %1213 = vmatpush1.msra.mxu0 %v678
        %1214 = vmatprep.subr.mxu0 %v686
        %1215 = vmatpush1.msra.mxu0 %v685
        %1216 = vmatprep.subr.mxu0 %v693
        %1217 = vmatpush1.msra.mxu0 %v692
        %1218 = vmatprep.subr.mxu0 %v700
        %1219 = vmatpush1.msra.mxu0 %v699
        %1220 = vmatprep.subr.mxu0 %v707
        %1221 = vmatpush1.msra.mxu0 %v706
        %1222 = vmatprep.subr.mxu0 %v714
        %1223 = vmatpush1.msra.mxu0 %v713
        %1224 = vmatprep.subr.mxu0 %v721
        %1225 = vmatpush1.msra.mxu0 %v720
        %1226 = vmatprep.subr.mxu0 %v728
        %1227 = vmatpush1.msra.mxu0 %v727
        %1228 = vmatprep.subr.mxu0 %v735
        %1229 = vmatpush1.msra.mxu0 %v734
        %1230 = vmatprep.subr.mxu0 %v742
        %1231 = vmatpush1.msra.mxu0 %v741
        %1232 = vmatprep.subr.mxu0 %v749
        %1233 = vmatpush1.msra.mxu0 %v748
        %1234 = vmatprep.subr.mxu0 %v756
        %1235 = vmatpush1.msra.mxu0 %v755
        %1236 = vmatprep.subr.mxu0 %v763
        %1237 = vmatpush1.msra.mxu0 %v762
        %1238 = vmatprep.subr.mxu0 %v770
        %1239 = vmatpush1.msra.mxu0 %v769
        %1240 = vmatprep.subr.mxu0 %v777
        %1241 = vmatpush1.msra.mxu0 %v776
        %1242 = vmatprep.subr.mxu0 %v784
        %1243 = vmatpush1.msra.mxu0 %v783
        %1244 = vmatprep.subr.mxu0 %v791
        %1245 = vmatpush1.msra.mxu0 %v790
        %1246 = vmatprep.subr.mxu0 %v798
        %1247 = vmatpush1.msra.mxu0 %v797
        %1248 = vmatprep.subr.mxu0 %v805
        %1249 = vmatpush1.msra.mxu0 %v804
        %1250 = vmatprep.subr.mxu0 %v812
        %1251 = vmatpush1.msra.mxu0 %v811
        %1252 = vmatprep.subr.mxu0 %v819
        %1253 = vmatpush1.msra.mxu0 %v818
        %1254 = vmatprep.subr.mxu0 %v826
        %1255 = vmatpush1.msra.mxu0 %v825
        %1256 = vmatprep.subr.mxu0 %v833
        %1257 = vmatpush1.msra.mxu0 %v832
        %1258 = vmatprep.mubr.f32.mxu0 %v580
        %1259 = vmatmul.mubr.f32.gmra.mrb[0].mxu0 %v579
        %v1260 = vpop.f32.mrb[0].mxu0
        %v1261 = vadd.f32 %v856, %v1260
        %v1262 = vpop.f32.mrb[0].mxu0
        %v1263 = vadd.f32 %v860, %v1262
        %1264 = vmatprep.mubr.f32.mxu0 %v582
        %1265 = vmatmul.mubr.f32.gmra.mrb[0].mxu0 %v581
        %v1266 = vpop.f32.mrb[0].mxu0
        %v1267 = vadd.f32 %v856, %v1266
        %v1268 = vpop.f32.mrb[0].mxu0
        %v1269 = vadd.f32 %v860, %v1268
        %1270 = vmatprep.mubr.f32.mxu0 %v584
        %1271 = vmatmul.mubr.f32.gmra.mrb[0].mxu0 %v583
        %v1272 = vpop.f32.mrb[0].mxu0
        %v1273 = vadd.f32 %v856, %v1272
        %v1274 = vpop.f32.mrb[0].mxu0
        %v1275 = vadd.f32 %v860, %v1274
        %1276 = vmatprep.mubr.f32.mxu0 %v586
        %1277 = vmatmul.mubr.f32.gmra.mrb[0].mxu0 %v585
        %v1278 = vpop.f32.mrb[0].mxu0
        %v1279 = vadd.f32 %v856, %v1278
        %v1280 = vpop.f32.mrb[0].mxu0
        %v1281 = vadd.f32 %v860, %v1280
        %1282 = vmatprep.mubr.f32.mxu0 %v588
        %1283 = vmatmul.mubr.f32.gmra.mrb[0].mxu0 %v587
        %v1284 = vpop.f32.mrb[0].mxu0
        %v1285 = vadd.f32 %v856, %v1284
        %v1286 = vpop.f32.mrb[0].mxu0
        %v1287 = vadd.f32 %v860, %v1286
        %1288 = vmatprep.mubr.f32.mxu0 %v590
        %1289 = vmatmul.mubr.f32.gmra.mrb[0].mxu0 %v589
        %v1290 = vpop.f32.mrb[0].mxu0
        %v1291 = vadd.f32 %v856, %v1290
        %v1292 = vpop.f32.mrb[0].mxu0
        %v1293 = vadd.f32 %v860, %v1292
        %1294 = vmatprep.mubr.f32.mxu0 %v592
        %1295 = vmatmul.mubr.f32.gmra.mrb[0].mxu0 %v591
        %v1296 = vpop.f32.mrb[0].mxu0
        %v1297 = vadd.f32 %v856, %v1296
        %v1298 = vpop.f32.mrb[0].mxu0
        %v1299 = vadd.f32 %v860, %v1298
        %1300 = vmatprep.mubr.f32.mxu0 %v594
        %1301 = vmatmul.mubr.f32.gmra.mrb[0].mxu0 %v593
        %v1302 = vpop.f32.mrb[0].mxu0
        %v1303 = vadd.f32 %v856, %v1302
        %v1304 = vpop.f32.mrb[0].mxu0
        %v1305 = vadd.f32 %v860, %v1304
        %1306 = vmatprep.mubr.f32.mxu0 %v596
        %1307 = vmatmul.mubr.f32.gmra.mrb[0].mxu0 %v595
        %v1308 = vpop.f32.mrb[0].mxu0
        %v1309 = vadd.f32 %v856, %v1308
        %v1310 = vpop.f32.mrb[0].mxu0
        %v1311 = vadd.f32 %v860, %v1310
        %1312 = vmatprep.mubr.f32.mxu0 %v598
        %1313 = vmatmul.mubr.f32.gmra.mrb[0].mxu0 %v597
        %v1314 = vpop.f32.mrb[0].mxu0
        %v1315 = vadd.f32 %v856, %v1314
        %v1316 = vpop.f32.mrb[0].mxu0
        %v1317 = vadd.f32 %v860, %v1316
        %1318 = vmatprep.mubr.f32.mxu0 %v600
        %1319 = vmatmul.mubr.f32.gmra.mrb[0].mxu0 %v599
        %v1320 = vpop.f32.mrb[0].mxu0
        %v1321 = vadd.f32 %v856, %v1320
        %v1322 = vpop.f32.mrb[0].mxu0
        %v1323 = vadd.f32 %v860, %v1322
        %1324 = vmatprep.mubr.f32.mxu0 %v602
        %1325 = vmatmul.mubr.f32.gmra.mrb[0].mxu0 %v601
        %v1326 = vpop.f32.mrb[0].mxu0
        %v1327 = vadd.f32 %v856, %v1326
        %v1328 = vpop.f32.mrb[0].mxu0
        %v1329 = vadd.f32 %v860, %v1328
        %1330 = vmatprep.mubr.f32.mxu0 %v604
        %1331 = vmatmul.mubr.f32.gmra.mrb[0].mxu0 %v603
        %v1332 = vpop.f32.mrb[0].mxu0
        %v1333 = vadd.f32 %v856, %v1332
        %v1334 = vpop.f32.mrb[0].mxu0
        %v1335 = vadd.f32 %v860, %v1334
        %1336 = vmatprep.mubr.f32.mxu0 %v606
        %1337 = vmatmul.mubr.f32.gmra.mrb[0].mxu0 %v605
        %v1338 = vpop.f32.mrb[0].mxu0
        %v1339 = vadd.f32 %v856, %v1338
        %v1340 = vpop.f32.mrb[0].mxu0
        %v1341 = vadd.f32 %v860, %v1340
        %1342 = vmatprep.mubr.f32.mxu0 %v608
        %1343 = vmatmul.mubr.f32.gmra.mrb[0].mxu0 %v607
        %v1344 = vpop.f32.mrb[0].mxu0
        %v1345 = vadd.f32 %v856, %v1344
        %v1346 = vpop.f32.mrb[0].mxu0
        %v1347 = vadd.f32 %v860, %v1346
        %1348 = vmatprep.mubr.f32.mxu0 %v610
        %1349 = vmatmul.mubr.f32.gmra.mrb[0].mxu0 %v609
        %v1350 = vpop.f32.mrb[0].mxu0
        %v1351 = vadd.f32 %v856, %v1350
        %v1352 = vpop.f32.mrb[0].mxu0
        %v1353 = vadd.f32 %v860, %v1352
        %1354 = vdwg.mxu0
        %1355 = vmatprep.subr.mxu0 0.0
        %1356 = vmatpush1.msra.mxu0 %v617
        %1357 = vmatprep.subr.mxu0 0.0
        %1358 = vmatpush1.msra.mxu0 %v624
        %1359 = vmatprep.subr.mxu0 0.0
        %1360 = vmatpush1.msra.mxu0 %v631
        %1361 = vmatprep.subr.mxu0 0.0
        %1362 = vmatpush1.msra.mxu0 %v638
        %1363 = vmatprep.subr.mxu0 0.0
        %1364 = vmatpush1.msra.mxu0 %v645
        %1365 = vmatprep.subr.mxu0 0.0
        %1366 = vmatpush1.msra.mxu0 %v652
        %1367 = vmatprep.subr.mxu0 0.0
        %1368 = vmatpush1.msra.mxu0 %v659
        %1369 = vmatprep.subr.mxu0 0.0
        %1370 = vmatpush1.msra.mxu0 %v666
        %1371 = vmatprep.subr.mxu0 0.0
        %1372 = vmatpush1.msra.mxu0 %v673
        %1373 = vmatprep.subr.mxu0 0.0
        %1374 = vmatpush1.msra.mxu0 %v680
        %1375 = vmatprep.subr.mxu0 0.0
        %1376 = vmatpush1.msra.mxu0 %v687
        %1377 = vmatprep.subr.mxu0 0.0
        %1378 = vmatpush1.msra.mxu0 %v694
        %1379 = vmatprep.subr.mxu0 0.0
        %1380 = vmatpush1.msra.mxu0 %v701
        %1381 = vmatprep.subr.mxu0 0.0
        %1382 = vmatpush1.msra.mxu0 %v708
        %1383 = vmatprep.subr.mxu0 0.0
        %1384 = vmatpush1.msra.mxu0 %v715
        %1385 = vmatprep.subr.mxu0 0.0
        %1386 = vmatpush1.msra.mxu0 %v722
        %1387 = vmatprep.subr.mxu0 0.0
        %1388 = vmatpush1.msra.mxu0 %v729
        %1389 = vmatprep.subr.mxu0 0.0
        %1390 = vmatpush1.msra.mxu0 %v736
        %1391 = vmatprep.subr.mxu0 0.0
        %1392 = vmatpush1.msra.mxu0 %v743
        %1393 = vmatprep.subr.mxu0 0.0
        %1394 = vmatpush1.msra.mxu0 %v750
        %1395 = vmatprep.subr.mxu0 0.0
        %1396 = vmatpush1.msra.mxu0 %v757
        %1397 = vmatprep.subr.mxu0 0.0
        %1398 = vmatpush1.msra.mxu0 %v764
        %1399 = vmatprep.subr.mxu0 0.0
        %1400 = vmatpush1.msra.mxu0 %v771
        %1401 = vmatprep.subr.mxu0 0.0
        %1402 = vmatpush1.msra.mxu0 %v778
        %1403 = vmatprep.subr.mxu0 0.0
        %1404 = vmatpush1.msra.mxu0 %v785
        %1405 = vmatprep.subr.mxu0 0.0
        %1406 = vmatpush1.msra.mxu0 %v792
        %1407 = vmatprep.subr.mxu0 0.0
        %1408 = vmatpush1.msra.mxu0 %v799
        %1409 = vmatprep.subr.mxu0 0.0
        %1410 = vmatpush1.msra.mxu0 %v806
        %1411 = vmatprep.subr.mxu0 0.0
        %1412 = vmatpush1.msra.mxu0 %v813
        %1413 = vmatprep.subr.mxu0 0.0
        %1414 = vmatpush1.msra.mxu0 %v820
        %1415 = vmatprep.subr.mxu0 0.0
        %1416 = vmatpush1.msra.mxu0 %v827
        %1417 = vmatprep.subr.mxu0 0.0
        %1418 = vmatpush1.msra.mxu0 %v834
        %1419 = vmatprep.mubr.f32.mxu0 %v580
        %1420 = vmatmul.mubr.f32.gmra.mrb[0].mxu0 %v579
        %v1421 = vpop.f32.mrb[0].mxu0
        %v1422 = vadd.f32 %v864, %v1421
        %v1423 = vpop.f32.mrb[0].mxu0
        %1424 = vmatprep.mubr.f32.mxu0 %v582
        %1425 = vmatmul.mubr.f32.gmra.mrb[0].mxu0 %v581
        %v1426 = vpop.f32.mrb[0].mxu0
        %v1427 = vadd.f32 %v864, %v1426
        %v1428 = vpop.f32.mrb[0].mxu0
        %1429 = vmatprep.mubr.f32.mxu0 %v584
        %1430 = vmatmul.mubr.f32.gmra.mrb[0].mxu0 %v583
        %v1431 = vpop.f32.mrb[0].mxu0
        %v1432 = vadd.f32 %v864, %v1431
        %v1433 = vpop.f32.mrb[0].mxu0
        %1434 = vmatprep.mubr.f32.mxu0 %v586
        %1435 = vmatmul.mubr.f32.gmra.mrb[0].mxu0 %v585
        %v1436 = vpop.f32.mrb[0].mxu0
        %v1437 = vadd.f32 %v864, %v1436
        %v1438 = vpop.f32.mrb[0].mxu0
        %1439 = vmatprep.mubr.f32.mxu0 %v588
        %1440 = vmatmul.mubr.f32.gmra.mrb[0].mxu0 %v587
        %v1441 = vpop.f32.mrb[0].mxu0
        %v1442 = vadd.f32 %v864, %v1441
        %v1443 = vpop.f32.mrb[0].mxu0
        %1444 = vmatprep.mubr.f32.mxu0 %v590
        %1445 = vmatmul.mubr.f32.gmra.mrb[0].mxu0 %v589
        %v1446 = vpop.f32.mrb[0].mxu0
        %v1447 = vadd.f32 %v864, %v1446
        %v1448 = vpop.f32.mrb[0].mxu0
        %1449 = vmatprep.mubr.f32.mxu0 %v592
        %1450 = vmatmul.mubr.f32.gmra.mrb[0].mxu0 %v591
        %v1451 = vpop.f32.mrb[0].mxu0
        %v1452 = vadd.f32 %v864, %v1451
        %v1453 = vpop.f32.mrb[0].mxu0
        %1454 = vmatprep.mubr.f32.mxu0 %v594
        %1455 = vmatmul.mubr.f32.gmra.mrb[0].mxu0 %v593
        %v1456 = vpop.f32.mrb[0].mxu0
        %v1457 = vadd.f32 %v864, %v1456
        %v1458 = vpop.f32.mrb[0].mxu0
        %1459 = vmatprep.mubr.f32.mxu0 %v596
        %1460 = vmatmul.mubr.f32.gmra.mrb[0].mxu0 %v595
        %v1461 = vpop.f32.mrb[0].mxu0
        %v1462 = vadd.f32 %v864, %v1461
        %v1463 = vpop.f32.mrb[0].mxu0
        %1464 = vmatprep.mubr.f32.mxu0 %v598
        %1465 = vmatmul.mubr.f32.gmra.mrb[0].mxu0 %v597
        %v1466 = vpop.f32.mrb[0].mxu0
        %v1467 = vadd.f32 %v864, %v1466
        %v1468 = vpop.f32.mrb[0].mxu0
        %1469 = vmatprep.mubr.f32.mxu0 %v600
        %1470 = vmatmul.mubr.f32.gmra.mrb[0].mxu0 %v599
        %v1471 = vpop.f32.mrb[0].mxu0
        %v1472 = vadd.f32 %v864, %v1471
        %v1473 = vpop.f32.mrb[0].mxu0
        %1474 = vmatprep.mubr.f32.mxu0 %v602
        %1475 = vmatmul.mubr.f32.gmra.mrb[0].mxu0 %v601
        %v1476 = vpop.f32.mrb[0].mxu0
        %v1477 = vadd.f32 %v864, %v1476
        %v1478 = vpop.f32.mrb[0].mxu0
        %1479 = vmatprep.mubr.f32.mxu0 %v604
        %1480 = vmatmul.mubr.f32.gmra.mrb[0].mxu0 %v603
        %v1481 = vpop.f32.mrb[0].mxu0
        %v1482 = vadd.f32 %v864, %v1481
        %v1483 = vpop.f32.mrb[0].mxu0
        %1484 = vmatprep.mubr.f32.mxu0 %v606
        %1485 = vmatmul.mubr.f32.gmra.mrb[0].mxu0 %v605
        %v1486 = vpop.f32.mrb[0].mxu0
        %v1487 = vadd.f32 %v864, %v1486
        %v1488 = vpop.f32.mrb[0].mxu0
        %1489 = vmatprep.mubr.f32.mxu0 %v608
        %1490 = vmatmul.mubr.f32.gmra.mrb[0].mxu0 %v607
        %v1491 = vpop.f32.mrb[0].mxu0
        %v1492 = vadd.f32 %v864, %v1491
        %v1493 = vpop.f32.mrb[0].mxu0
        %1494 = vmatprep.mubr.f32.mxu0 %v610
        %1495 = vmatmul.mubr.f32.gmra.mrb[0].mxu0 %v609
        %v1496 = vpop.f32.mrb[0].mxu0
        %v1497 = vadd.f32 %v864, %v1496
        %v1498 = vpop.f32.mrb[0].mxu0
        %1499 = vdwg.mxu0
        %v1500 = vxor.u32 %v939, 2147483648
        %v1501 = vxor.u32 %v941, 2147483648
        %v1502 = vxor.u32 %v1100, 2147483648
        %v1503 = vxor.u32 %v1102, 2147483648
        %v1504 = vxor.u32 %v1261, 2147483648
        %v1505 = vxor.u32 %v1263, 2147483648
        %v1506 = vxor.u32 %v1422, 2147483648
        %v1507 = vxor.u32 %v945, 2147483648
        %v1508 = vxor.u32 %v947, 2147483648
        %v1509 = vxor.u32 %v1106, 2147483648
        %v1510 = vxor.u32 %v1108, 2147483648
        %v1511 = vxor.u32 %v1267, 2147483648
        %v1512 = vxor.u32 %v1269, 2147483648
        %v1513 = vxor.u32 %v1427, 2147483648
        %v1514 = vxor.u32 %v951, 2147483648
        %v1515 = vxor.u32 %v953, 2147483648
        %v1516 = vxor.u32 %v1112, 2147483648
        %v1517 = vxor.u32 %v1114, 2147483648
        %v1518 = vxor.u32 %v1273, 2147483648
        %v1519 = vxor.u32 %v1275, 2147483648
        %v1520 = vxor.u32 %v1432, 2147483648
        %v1521 = vxor.u32 %v957, 2147483648
        %v1522 = vxor.u32 %v959, 2147483648
        %v1523 = vxor.u32 %v1118, 2147483648
        %v1524 = vxor.u32 %v1120, 2147483648
        %v1525 = vxor.u32 %v1279, 2147483648
        %v1526 = vxor.u32 %v1281, 2147483648
        %v1527 = vxor.u32 %v1437, 2147483648
        %v1528 = vxor.u32 %v963, 2147483648
        %v1529 = vxor.u32 %v965, 2147483648
        %v1530 = vxor.u32 %v1124, 2147483648
        %v1531 = vxor.u32 %v1126, 2147483648
        %v1532 = vxor.u32 %v1285, 2147483648
        %v1533 = vxor.u32 %v1287, 2147483648
        %v1534 = vxor.u32 %v1442, 2147483648
        %v1535 = vxor.u32 %v969, 2147483648
        %v1536 = vxor.u32 %v971, 2147483648
        %v1537 = vxor.u32 %v1130, 2147483648
        %v1538 = vxor.u32 %v1132, 2147483648
        %v1539 = vxor.u32 %v1291, 2147483648
        %v1540 = vxor.u32 %v1293, 2147483648
        %v1541 = vxor.u32 %v1447, 2147483648
        %v1542 = vxor.u32 %v975, 2147483648
        %v1543 = vxor.u32 %v977, 2147483648
        %v1544 = vxor.u32 %v1136, 2147483648
        %v1545 = vxor.u32 %v1138, 2147483648
        %v1546 = vxor.u32 %v1297, 2147483648
        %v1547 = vxor.u32 %v1299, 2147483648
        %v1548 = vxor.u32 %v1452, 2147483648
        %v1549 = vxor.u32 %v981, 2147483648
        %v1550 = vxor.u32 %v983, 2147483648
        %v1551 = vxor.u32 %v1142, 2147483648
        %v1552 = vxor.u32 %v1144, 2147483648
        %v1553 = vxor.u32 %v1303, 2147483648
        %v1554 = vxor.u32 %v1305, 2147483648
        %v1555 = vxor.u32 %v1457, 2147483648
        %v1556 = vxor.u32 %v987, 2147483648
        %v1557 = vxor.u32 %v989, 2147483648
        %v1558 = vxor.u32 %v1148, 2147483648
        %v1559 = vxor.u32 %v1150, 2147483648
        %v1560 = vxor.u32 %v1309, 2147483648
        %v1561 = vxor.u32 %v1311, 2147483648
        %v1562 = vxor.u32 %v1462, 2147483648
        %v1563 = vxor.u32 %v993, 2147483648
        %v1564 = vxor.u32 %v995, 2147483648
        %v1565 = vxor.u32 %v1154, 2147483648
        %v1566 = vxor.u32 %v1156, 2147483648
        %v1567 = vxor.u32 %v1315, 2147483648
        %v1568 = vxor.u32 %v1317, 2147483648
        %v1569 = vxor.u32 %v1467, 2147483648
        %v1570 = vxor.u32 %v999, 2147483648
        %v1571 = vxor.u32 %v1001, 2147483648
        %v1572 = vxor.u32 %v1160, 2147483648
        %v1573 = vxor.u32 %v1162, 2147483648
        %v1574 = vxor.u32 %v1321, 2147483648
        %v1575 = vxor.u32 %v1323, 2147483648
        %v1576 = vxor.u32 %v1472, 2147483648
        %v1577 = vxor.u32 %v1005, 2147483648
        %v1578 = vxor.u32 %v1007, 2147483648
        %v1579 = vxor.u32 %v1166, 2147483648
        %v1580 = vxor.u32 %v1168, 2147483648
        %v1581 = vxor.u32 %v1327, 2147483648
        %v1582 = vxor.u32 %v1329, 2147483648
        %v1583 = vxor.u32 %v1477, 2147483648
        %v1584 = vxor.u32 %v1011, 2147483648
        %v1585 = vxor.u32 %v1013, 2147483648
        %v1586 = vxor.u32 %v1172, 2147483648
        %v1587 = vxor.u32 %v1174, 2147483648
        %v1588 = vxor.u32 %v1333, 2147483648
        %v1589 = vxor.u32 %v1335, 2147483648
        %v1590 = vxor.u32 %v1482, 2147483648
        %v1591 = vxor.u32 %v1017, 2147483648
        %v1592 = vxor.u32 %v1019, 2147483648
        %v1593 = vxor.u32 %v1178, 2147483648
        %v1594 = vxor.u32 %v1180, 2147483648
        %v1595 = vxor.u32 %v1339, 2147483648
        %v1596 = vxor.u32 %v1341, 2147483648
        %v1597 = vxor.u32 %v1487, 2147483648
        %v1598 = vxor.u32 %v1023, 2147483648
        %v1599 = vxor.u32 %v1025, 2147483648
        %v1600 = vxor.u32 %v1184, 2147483648
        %v1601 = vxor.u32 %v1186, 2147483648
        %v1602 = vxor.u32 %v1345, 2147483648
        %v1603 = vxor.u32 %v1347, 2147483648
        %v1604 = vxor.u32 %v1492, 2147483648
        %v1605 = vxor.u32 %v1029, 2147483648
        %v1606 = vxor.u32 %v1031, 2147483648
        %v1607 = vxor.u32 %v1190, 2147483648
        %v1608 = vxor.u32 %v1192, 2147483648
        %v1609 = vxor.u32 %v1351, 2147483648
        %v1610 = vxor.u32 %v1353, 2147483648
        %v1611 = vxor.u32 %v1497, 2147483648
        %v1612 = vmul.f32 %v1500, 1.442695
        %v1613 = vpow.pop %v1612
        %v1614 = vmul.f32 %v1501, 1.442695
        %v1615 = vpow.pop %v1614
        %v1616 = vmul.f32 %v1502, 1.442695
        %v1617 = vpow.pop %v1616
        %v1618 = vmul.f32 %v1503, 1.442695
        %v1619 = vpow.pop %v1618
        %v1620 = vmul.f32 %v1504, 1.442695
        %v1621 = vpow.pop %v1620
        %v1622 = vmul.f32 %v1505, 1.442695
        %v1623 = vpow.pop %v1622
        %v1624 = vmul.f32 %v1506, 1.442695
        %v1625 = vpow.pop %v1624
        %v1626 = vmul.f32 %v1507, 1.442695
        %v1627 = vpow.pop %v1626
        %v1628 = vmul.f32 %v1508, 1.442695
        %v1629 = vpow.pop %v1628
        %v1630 = vmul.f32 %v1509, 1.442695
        %v1631 = vpow.pop %v1630
        %v1632 = vmul.f32 %v1510, 1.442695
        %v1633 = vpow.pop %v1632
        %v1634 = vmul.f32 %v1511, 1.442695
        %v1635 = vpow.pop %v1634
        %v1636 = vmul.f32 %v1512, 1.442695
        %v1637 = vpow.pop %v1636
        %v1638 = vmul.f32 %v1513, 1.442695
        %v1639 = vpow.pop %v1638
        %v1640 = vmul.f32 %v1514, 1.442695
        %v1641 = vpow.pop %v1640
        %v1642 = vmul.f32 %v1515, 1.442695
        %v1643 = vpow.pop %v1642
        %v1644 = vmul.f32 %v1516, 1.442695
        %v1645 = vpow.pop %v1644
        %v1646 = vmul.f32 %v1517, 1.442695
        %v1647 = vpow.pop %v1646
        %v1648 = vmul.f32 %v1518, 1.442695
        %v1649 = vpow.pop %v1648
        %v1650 = vmul.f32 %v1519, 1.442695
        %v1651 = vpow.pop %v1650
        %v1652 = vmul.f32 %v1520, 1.442695
        %v1653 = vpow.pop %v1652
        %v1654 = vmul.f32 %v1521, 1.442695
        %v1655 = vpow.pop %v1654
        %v1656 = vmul.f32 %v1522, 1.442695
        %v1657 = vpow.pop %v1656
        %v1658 = vmul.f32 %v1523, 1.442695
        %v1659 = vpow.pop %v1658
        %v1660 = vmul.f32 %v1524, 1.442695
        %v1661 = vpow.pop %v1660
        %v1662 = vmul.f32 %v1525, 1.442695
        %v1663 = vpow.pop %v1662
        %v1664 = vmul.f32 %v1526, 1.442695
        %v1665 = vpow.pop %v1664
        %v1666 = vmul.f32 %v1527, 1.442695
        %v1667 = vpow.pop %v1666
        %v1668 = vmul.f32 %v1528, 1.442695
        %v1669 = vpow.pop %v1668
        %v1670 = vmul.f32 %v1529, 1.442695
        %v1671 = vpow.pop %v1670
        %v1672 = vmul.f32 %v1530, 1.442695
        %v1673 = vpow.pop %v1672
        %v1674 = vmul.f32 %v1531, 1.442695
        %v1675 = vpow.pop %v1674
        %v1676 = vmul.f32 %v1532, 1.442695
        %v1677 = vpow.pop %v1676
        %v1678 = vmul.f32 %v1533, 1.442695
        %v1679 = vpow.pop %v1678
        %v1680 = vmul.f32 %v1534, 1.442695
        %v1681 = vpow.pop %v1680
        %v1682 = vmul.f32 %v1535, 1.442695
        %v1683 = vpow.pop %v1682
        %v1684 = vmul.f32 %v1536, 1.442695
        %v1685 = vpow.pop %v1684
        %v1686 = vmul.f32 %v1537, 1.442695
        %v1687 = vpow.pop %v1686
        %v1688 = vmul.f32 %v1538, 1.442695
        %v1689 = vpow.pop %v1688
        %v1690 = vmul.f32 %v1539, 1.442695
        %v1691 = vpow.pop %v1690
        %v1692 = vmul.f32 %v1540, 1.442695
        %v1693 = vpow.pop %v1692
        %v1694 = vmul.f32 %v1541, 1.442695
        %v1695 = vpow.pop %v1694
        %v1696 = vmul.f32 %v1542, 1.442695
        %v1697 = vpow.pop %v1696
        %v1698 = vmul.f32 %v1543, 1.442695
        %v1699 = vpow.pop %v1698
        %v1700 = vmul.f32 %v1544, 1.442695
        %v1701 = vpow.pop %v1700
        %v1702 = vmul.f32 %v1545, 1.442695
        %v1703 = vpow.pop %v1702
        %v1704 = vmul.f32 %v1546, 1.442695
        %v1705 = vpow.pop %v1704
        %v1706 = vmul.f32 %v1547, 1.442695
        %v1707 = vpow.pop %v1706
        %v1708 = vmul.f32 %v1548, 1.442695
        %v1709 = vpow.pop %v1708
        %v1710 = vmul.f32 %v1549, 1.442695
        %v1711 = vpow.pop %v1710
        %v1712 = vmul.f32 %v1550, 1.442695
        %v1713 = vpow.pop %v1712
        %v1714 = vmul.f32 %v1551, 1.442695
        %v1715 = vpow.pop %v1714
        %v1716 = vmul.f32 %v1552, 1.442695
        %v1717 = vpow.pop %v1716
        %v1718 = vmul.f32 %v1553, 1.442695
        %v1719 = vpow.pop %v1718
        %v1720 = vmul.f32 %v1554, 1.442695
        %v1721 = vpow.pop %v1720
        %v1722 = vmul.f32 %v1555, 1.442695
        %v1723 = vpow.pop %v1722
        %v1724 = vmul.f32 %v1556, 1.442695
        %v1725 = vpow.pop %v1724
        %v1726 = vmul.f32 %v1557, 1.442695
        %v1727 = vpow.pop %v1726
        %v1728 = vmul.f32 %v1558, 1.442695
        %v1729 = vpow.pop %v1728
        %v1730 = vmul.f32 %v1559, 1.442695
        %v1731 = vpow.pop %v1730
        %v1732 = vmul.f32 %v1560, 1.442695
        %v1733 = vpow.pop %v1732
        %v1734 = vmul.f32 %v1561, 1.442695
        %v1735 = vpow.pop %v1734
        %v1736 = vmul.f32 %v1562, 1.442695
        %v1737 = vpow.pop %v1736
        %v1738 = vmul.f32 %v1563, 1.442695
        %v1739 = vpow.pop %v1738
        %v1740 = vmul.f32 %v1564, 1.442695
        %v1741 = vpow.pop %v1740
        %v1742 = vmul.f32 %v1565, 1.442695
        %v1743 = vpow.pop %v1742
        %v1744 = vmul.f32 %v1566, 1.442695
        %v1745 = vpow.pop %v1744
        %v1746 = vmul.f32 %v1567, 1.442695
        %v1747 = vpow.pop %v1746
        %v1748 = vmul.f32 %v1568, 1.442695
        %v1749 = vpow.pop %v1748
        %v1750 = vmul.f32 %v1569, 1.442695
        %v1751 = vpow.pop %v1750
        %v1752 = vmul.f32 %v1570, 1.442695
        %v1753 = vpow.pop %v1752
        %v1754 = vmul.f32 %v1571, 1.442695
        %v1755 = vpow.pop %v1754
        %v1756 = vmul.f32 %v1572, 1.442695
        %v1757 = vpow.pop %v1756
        %v1758 = vmul.f32 %v1573, 1.442695
        %v1759 = vpow.pop %v1758
        %v1760 = vmul.f32 %v1574, 1.442695
        %v1761 = vpow.pop %v1760
        %v1762 = vmul.f32 %v1575, 1.442695
        %v1763 = vpow.pop %v1762
        %v1764 = vmul.f32 %v1576, 1.442695
        %v1765 = vpow.pop %v1764
        %v1766 = vmul.f32 %v1577, 1.442695
        %v1767 = vpow.pop %v1766
        %v1768 = vmul.f32 %v1578, 1.442695
        %v1769 = vpow.pop %v1768
        %v1770 = vmul.f32 %v1579, 1.442695
        %v1771 = vpow.pop %v1770
        %v1772 = vmul.f32 %v1580, 1.442695
        %v1773 = vpow.pop %v1772
        %v1774 = vmul.f32 %v1581, 1.442695
        %v1775 = vpow.pop %v1774
        %v1776 = vmul.f32 %v1582, 1.442695
        %v1777 = vpow.pop %v1776
        %v1778 = vmul.f32 %v1583, 1.442695
        %v1779 = vpow.pop %v1778
        %v1780 = vmul.f32 %v1584, 1.442695
        %v1781 = vpow.pop %v1780
        %v1782 = vmul.f32 %v1585, 1.442695
        %v1783 = vpow.pop %v1782
        %v1784 = vmul.f32 %v1586, 1.442695
        %v1785 = vpow.pop %v1784
        %v1786 = vmul.f32 %v1587, 1.442695
        %v1787 = vpow.pop %v1786
        %v1788 = vmul.f32 %v1588, 1.442695
        %v1789 = vpow.pop %v1788
        %v1790 = vmul.f32 %v1589, 1.442695
        %v1791 = vpow.pop %v1790
        %v1792 = vmul.f32 %v1590, 1.442695
        %v1793 = vpow.pop %v1792
        %v1794 = vmul.f32 %v1591, 1.442695
        %v1795 = vpow.pop %v1794
        %v1796 = vmul.f32 %v1592, 1.442695
        %v1797 = vpow.pop %v1796
        %v1798 = vmul.f32 %v1593, 1.442695
        %v1799 = vpow.pop %v1798
        %v1800 = vmul.f32 %v1594, 1.442695
        %v1801 = vpow.pop %v1800
        %v1802 = vmul.f32 %v1595, 1.442695
        %v1803 = vpow.pop %v1802
        %v1804 = vmul.f32 %v1596, 1.442695
        %v1805 = vpow.pop %v1804
        %v1806 = vmul.f32 %v1597, 1.442695
        %v1807 = vpow.pop %v1806
        %v1808 = vmul.f32 %v1598, 1.442695
        %v1809 = vpow.pop %v1808
        %v1810 = vmul.f32 %v1599, 1.442695
        %v1811 = vpow.pop %v1810
        %v1812 = vmul.f32 %v1600, 1.442695
        %v1813 = vpow.pop %v1812
        %v1814 = vmul.f32 %v1601, 1.442695
        %v1815 = vpow.pop %v1814
        %v1816 = vmul.f32 %v1602, 1.442695
        %v1817 = vpow.pop %v1816
        %v1818 = vmul.f32 %v1603, 1.442695
        %v1819 = vpow.pop %v1818
        %v1820 = vmul.f32 %v1604, 1.442695
        %v1821 = vpow.pop %v1820
        %v1822 = vmul.f32 %v1605, 1.442695
        %v1823 = vpow.pop %v1822
        %v1824 = vmul.f32 %v1606, 1.442695
        %v1825 = vpow.pop %v1824
        %v1826 = vmul.f32 %v1607, 1.442695
        %v1827 = vpow.pop %v1826
        %v1828 = vmul.f32 %v1608, 1.442695
        %v1829 = vpow.pop %v1828
        %v1830 = vmul.f32 %v1609, 1.442695
        %v1831 = vpow.pop %v1830
        %v1832 = vmul.f32 %v1610, 1.442695
        %v1833 = vpow.pop %v1832
        %v1834 = vmul.f32 %v1611, 1.442695
        %v1835 = vpow.pop %v1834
        %v1836 = vadd.f32 %v1613, 1.0
        %v1837 = vadd.f32 %v1615, 1.0
        %v1838 = vadd.f32 %v1617, 1.0
        %v1839 = vadd.f32 %v1619, 1.0
        %v1840 = vadd.f32 %v1621, 1.0
        %v1841 = vadd.f32 %v1623, 1.0
        %v1842 = vadd.f32 %v1625, 1.0
        %v1843 = vadd.f32 %v1627, 1.0
        %v1844 = vadd.f32 %v1629, 1.0
        %v1845 = vadd.f32 %v1631, 1.0
        %v1846 = vadd.f32 %v1633, 1.0
        %v1847 = vadd.f32 %v1635, 1.0
        %v1848 = vadd.f32 %v1637, 1.0
        %v1849 = vadd.f32 %v1639, 1.0
        %v1850 = vadd.f32 %v1641, 1.0
        %v1851 = vadd.f32 %v1643, 1.0
        %v1852 = vadd.f32 %v1645, 1.0
        %v1853 = vadd.f32 %v1647, 1.0
        %v1854 = vadd.f32 %v1649, 1.0
        %v1855 = vadd.f32 %v1651, 1.0
        %v1856 = vadd.f32 %v1653, 1.0
        %v1857 = vadd.f32 %v1655, 1.0
        %v1858 = vadd.f32 %v1657, 1.0
        %v1859 = vadd.f32 %v1659, 1.0
        %v1860 = vadd.f32 %v1661, 1.0
        %v1861 = vadd.f32 %v1663, 1.0
        %v1862 = vadd.f32 %v1665, 1.0
        %v1863 = vadd.f32 %v1667, 1.0
        %v1864 = vadd.f32 %v1669, 1.0
        %v1865 = vadd.f32 %v1671, 1.0
        %v1866 = vadd.f32 %v1673, 1.0
        %v1867 = vadd.f32 %v1675, 1.0
        %v1868 = vadd.f32 %v1677, 1.0
        %v1869 = vadd.f32 %v1679, 1.0
        %v1870 = vadd.f32 %v1681, 1.0
        %v1871 = vadd.f32 %v1683, 1.0
        %v1872 = vadd.f32 %v1685, 1.0
        %v1873 = vadd.f32 %v1687, 1.0
        %v1874 = vadd.f32 %v1689, 1.0
        %v1875 = vadd.f32 %v1691, 1.0
        %v1876 = vadd.f32 %v1693, 1.0
        %v1877 = vadd.f32 %v1695, 1.0
        %v1878 = vadd.f32 %v1697, 1.0
        %v1879 = vadd.f32 %v1699, 1.0
        %v1880 = vadd.f32 %v1701, 1.0
        %v1881 = vadd.f32 %v1703, 1.0
        %v1882 = vadd.f32 %v1705, 1.0
        %v1883 = vadd.f32 %v1707, 1.0
        %v1884 = vadd.f32 %v1709, 1.0
        %v1885 = vadd.f32 %v1711, 1.0
        %v1886 = vadd.f32 %v1713, 1.0
        %v1887 = vadd.f32 %v1715, 1.0
        %v1888 = vadd.f32 %v1717, 1.0
        %v1889 = vadd.f32 %v1719, 1.0
        %v1890 = vadd.f32 %v1721, 1.0
        %v1891 = vadd.f32 %v1723, 1.0
        %v1892 = vadd.f32 %v1725, 1.0
        %v1893 = vadd.f32 %v1727, 1.0
        %v1894 = vadd.f32 %v1729, 1.0
        %v1895 = vadd.f32 %v1731, 1.0
        %v1896 = vadd.f32 %v1733, 1.0
        %v1897 = vadd.f32 %v1735, 1.0
        %v1898 = vadd.f32 %v1737, 1.0
        %v1899 = vadd.f32 %v1739, 1.0
        %v1900 = vadd.f32 %v1741, 1.0
        %v1901 = vadd.f32 %v1743, 1.0
        %v1902 = vadd.f32 %v1745, 1.0
        %v1903 = vadd.f32 %v1747, 1.0
        %v1904 = vadd.f32 %v1749, 1.0
        %v1905 = vadd.f32 %v1751, 1.0
        %v1906 = vadd.f32 %v1753, 1.0
        %v1907 = vadd.f32 %v1755, 1.0
        %v1908 = vadd.f32 %v1757, 1.0
        %v1909 = vadd.f32 %v1759, 1.0
        %v1910 = vadd.f32 %v1761, 1.0
        %v1911 = vadd.f32 %v1763, 1.0
        %v1912 = vadd.f32 %v1765, 1.0
        %v1913 = vadd.f32 %v1767, 1.0
        %v1914 = vadd.f32 %v1769, 1.0
        %v1915 = vadd.f32 %v1771, 1.0
        %v1916 = vadd.f32 %v1773, 1.0
        %v1917 = vadd.f32 %v1775, 1.0
        %v1918 = vadd.f32 %v1777, 1.0
        %v1919 = vadd.f32 %v1779, 1.0
        %v1920 = vadd.f32 %v1781, 1.0
        %v1921 = vadd.f32 %v1783, 1.0
        %v1922 = vadd.f32 %v1785, 1.0
        %v1923 = vadd.f32 %v1787, 1.0
        %v1924 = vadd.f32 %v1789, 1.0
        %v1925 = vadd.f32 %v1791, 1.0
        %v1926 = vadd.f32 %v1793, 1.0
        %v1927 = vadd.f32 %v1795, 1.0
        %v1928 = vadd.f32 %v1797, 1.0
        %v1929 = vadd.f32 %v1799, 1.0
        %v1930 = vadd.f32 %v1801, 1.0
        %v1931 = vadd.f32 %v1803, 1.0
        %v1932 = vadd.f32 %v1805, 1.0
        %v1933 = vadd.f32 %v1807, 1.0
        %v1934 = vadd.f32 %v1809, 1.0
        %v1935 = vadd.f32 %v1811, 1.0
        %v1936 = vadd.f32 %v1813, 1.0
        %v1937 = vadd.f32 %v1815, 1.0
        %v1938 = vadd.f32 %v1817, 1.0
        %v1939 = vadd.f32 %v1819, 1.0
        %v1940 = vadd.f32 %v1821, 1.0
        %v1941 = vadd.f32 %v1823, 1.0
        %v1942 = vadd.f32 %v1825, 1.0
        %v1943 = vadd.f32 %v1827, 1.0
        %v1944 = vadd.f32 %v1829, 1.0
        %v1945 = vadd.f32 %v1831, 1.0
        %v1946 = vadd.f32 %v1833, 1.0
        %v1947 = vadd.f32 %v1835, 1.0
        %v1948 = vrcp.pop %v1836
        %v1949 = vmul.f32 1.0, %v1948
        %v1950 = vrcp.pop %v1837
        %v1951 = vmul.f32 1.0, %v1950
        %v1952 = vrcp.pop %v1838
        %v1953 = vmul.f32 1.0, %v1952
        %v1954 = vrcp.pop %v1839
        %v1955 = vmul.f32 1.0, %v1954
        %v1956 = vrcp.pop %v1840
        %v1957 = vmul.f32 1.0, %v1956
        %v1958 = vrcp.pop %v1841
        %v1959 = vmul.f32 1.0, %v1958
        %v1960 = vrcp.pop %v1842
        %v1961 = vmul.f32 1.0, %v1960
        %v1962 = vrcp.pop %v1843
        %v1963 = vmul.f32 1.0, %v1962
        %v1964 = vrcp.pop %v1844
        %v1965 = vmul.f32 1.0, %v1964
        %v1966 = vrcp.pop %v1845
        %v1967 = vmul.f32 1.0, %v1966
        %v1968 = vrcp.pop %v1846
        %v1969 = vmul.f32 1.0, %v1968
        %v1970 = vrcp.pop %v1847
        %v1971 = vmul.f32 1.0, %v1970
        %v1972 = vrcp.pop %v1848
        %v1973 = vmul.f32 1.0, %v1972
        %v1974 = vrcp.pop %v1849
        %v1975 = vmul.f32 1.0, %v1974
        %v1976 = vrcp.pop %v1850
        %v1977 = vmul.f32 1.0, %v1976
        %v1978 = vrcp.pop %v1851
        %v1979 = vmul.f32 1.0, %v1978
        %v1980 = vrcp.pop %v1852
        %v1981 = vmul.f32 1.0, %v1980
        %v1982 = vrcp.pop %v1853
        %v1983 = vmul.f32 1.0, %v1982
        %v1984 = vrcp.pop %v1854
        %v1985 = vmul.f32 1.0, %v1984
        %v1986 = vrcp.pop %v1855
        %v1987 = vmul.f32 1.0, %v1986
        %v1988 = vrcp.pop %v1856
        %v1989 = vmul.f32 1.0, %v1988
        %v1990 = vrcp.pop %v1857
        %v1991 = vmul.f32 1.0, %v1990
        %v1992 = vrcp.pop %v1858
        %v1993 = vmul.f32 1.0, %v1992
        %v1994 = vrcp.pop %v1859
        %v1995 = vmul.f32 1.0, %v1994
        %v1996 = vrcp.pop %v1860
        %v1997 = vmul.f32 1.0, %v1996
        %v1998 = vrcp.pop %v1861
        %v1999 = vmul.f32 1.0, %v1998
        %v2000 = vrcp.pop %v1862
        %v2001 = vmul.f32 1.0, %v2000
        %v2002 = vrcp.pop %v1863
        %v2003 = vmul.f32 1.0, %v2002
        %v2004 = vrcp.pop %v1864
        %v2005 = vmul.f32 1.0, %v2004
        %v2006 = vrcp.pop %v1865
        %v2007 = vmul.f32 1.0, %v2006
        %v2008 = vrcp.pop %v1866
        %v2009 = vmul.f32 1.0, %v2008
        %v2010 = vrcp.pop %v1867
        %v2011 = vmul.f32 1.0, %v2010
        %v2012 = vrcp.pop %v1868
        %v2013 = vmul.f32 1.0, %v2012
        %v2014 = vrcp.pop %v1869
        %v2015 = vmul.f32 1.0, %v2014
        %v2016 = vrcp.pop %v1870
        %v2017 = vmul.f32 1.0, %v2016
        %v2018 = vrcp.pop %v1871
        %v2019 = vmul.f32 1.0, %v2018
        %v2020 = vrcp.pop %v1872
        %v2021 = vmul.f32 1.0, %v2020
        %v2022 = vrcp.pop %v1873
        %v2023 = vmul.f32 1.0, %v2022
        %v2024 = vrcp.pop %v1874
        %v2025 = vmul.f32 1.0, %v2024
        %v2026 = vrcp.pop %v1875
        %v2027 = vmul.f32 1.0, %v2026
        %v2028 = vrcp.pop %v1876
        %v2029 = vmul.f32 1.0, %v2028
        %v2030 = vrcp.pop %v1877
        %v2031 = vmul.f32 1.0, %v2030
        %v2032 = vrcp.pop %v1878
        %v2033 = vmul.f32 1.0, %v2032
        %v2034 = vrcp.pop %v1879
        %v2035 = vmul.f32 1.0, %v2034
        %v2036 = vrcp.pop %v1880
        %v2037 = vmul.f32 1.0, %v2036
        %v2038 = vrcp.pop %v1881
        %v2039 = vmul.f32 1.0, %v2038
        %v2040 = vrcp.pop %v1882
        %v2041 = vmul.f32 1.0, %v2040
        %v2042 = vrcp.pop %v1883
        %v2043 = vmul.f32 1.0, %v2042
        %v2044 = vrcp.pop %v1884
        %v2045 = vmul.f32 1.0, %v2044
        %v2046 = vrcp.pop %v1885
        %v2047 = vmul.f32 1.0, %v2046
        %v2048 = vrcp.pop %v1886
        %v2049 = vmul.f32 1.0, %v2048
        %v2050 = vrcp.pop %v1887
        %v2051 = vmul.f32 1.0, %v2050
        %v2052 = vrcp.pop %v1888
        %v2053 = vmul.f32 1.0, %v2052
        %v2054 = vrcp.pop %v1889
        %v2055 = vmul.f32 1.0, %v2054
        %v2056 = vrcp.pop %v1890
        %v2057 = vmul.f32 1.0, %v2056
        %v2058 = vrcp.pop %v1891
        %v2059 = vmul.f32 1.0, %v2058
        %v2060 = vrcp.pop %v1892
        %v2061 = vmul.f32 1.0, %v2060
        %v2062 = vrcp.pop %v1893
        %v2063 = vmul.f32 1.0, %v2062
        %v2064 = vrcp.pop %v1894
        %v2065 = vmul.f32 1.0, %v2064
        %v2066 = vrcp.pop %v1895
        %v2067 = vmul.f32 1.0, %v2066
        %v2068 = vrcp.pop %v1896
        %v2069 = vmul.f32 1.0, %v2068
        %v2070 = vrcp.pop %v1897
        %v2071 = vmul.f32 1.0, %v2070
        %v2072 = vrcp.pop %v1898
        %v2073 = vmul.f32 1.0, %v2072
        %v2074 = vrcp.pop %v1899
        %v2075 = vmul.f32 1.0, %v2074
        %v2076 = vrcp.pop %v1900
        %v2077 = vmul.f32 1.0, %v2076
        %v2078 = vrcp.pop %v1901
        %v2079 = vmul.f32 1.0, %v2078
        %v2080 = vrcp.pop %v1902
        %v2081 = vmul.f32 1.0, %v2080
        %v2082 = vrcp.pop %v1903
        %v2083 = vmul.f32 1.0, %v2082
        %v2084 = vrcp.pop %v1904
        %v2085 = vmul.f32 1.0, %v2084
        %v2086 = vrcp.pop %v1905
        %v2087 = vmul.f32 1.0, %v2086
        %v2088 = vrcp.pop %v1906
        %v2089 = vmul.f32 1.0, %v2088
        %v2090 = vrcp.pop %v1907
        %v2091 = vmul.f32 1.0, %v2090
        %v2092 = vrcp.pop %v1908
        %v2093 = vmul.f32 1.0, %v2092
        %v2094 = vrcp.pop %v1909
        %v2095 = vmul.f32 1.0, %v2094
        %v2096 = vrcp.pop %v1910
        %v2097 = vmul.f32 1.0, %v2096
        %v2098 = vrcp.pop %v1911
        %v2099 = vmul.f32 1.0, %v2098
        %v2100 = vrcp.pop %v1912
        %v2101 = vmul.f32 1.0, %v2100
        %v2102 = vrcp.pop %v1913
        %v2103 = vmul.f32 1.0, %v2102
        %v2104 = vrcp.pop %v1914
        %v2105 = vmul.f32 1.0, %v2104
        %v2106 = vrcp.pop %v1915
        %v2107 = vmul.f32 1.0, %v2106
        %v2108 = vrcp.pop %v1916
        %v2109 = vmul.f32 1.0, %v2108
        %v2110 = vrcp.pop %v1917
        %v2111 = vmul.f32 1.0, %v2110
        %v2112 = vrcp.pop %v1918
        %v2113 = vmul.f32 1.0, %v2112
        %v2114 = vrcp.pop %v1919
        %v2115 = vmul.f32 1.0, %v2114
        %v2116 = vrcp.pop %v1920
        %v2117 = vmul.f32 1.0, %v2116
        %v2118 = vrcp.pop %v1921
        %v2119 = vmul.f32 1.0, %v2118
        %v2120 = vrcp.pop %v1922
        %v2121 = vmul.f32 1.0, %v2120
        %v2122 = vrcp.pop %v1923
        %v2123 = vmul.f32 1.0, %v2122
        %v2124 = vrcp.pop %v1924
        %v2125 = vmul.f32 1.0, %v2124
        %v2126 = vrcp.pop %v1925
        %v2127 = vmul.f32 1.0, %v2126
        %v2128 = vrcp.pop %v1926
        %v2129 = vmul.f32 1.0, %v2128
        %v2130 = vrcp.pop %v1927
        %v2131 = vmul.f32 1.0, %v2130
        %v2132 = vrcp.pop %v1928
        %v2133 = vmul.f32 1.0, %v2132
        %v2134 = vrcp.pop %v1929
        %v2135 = vmul.f32 1.0, %v2134
        %v2136 = vrcp.pop %v1930
        %v2137 = vmul.f32 1.0, %v2136
        %v2138 = vrcp.pop %v1931
        %v2139 = vmul.f32 1.0, %v2138
        %v2140 = vrcp.pop %v1932
        %v2141 = vmul.f32 1.0, %v2140
        %v2142 = vrcp.pop %v1933
        %v2143 = vmul.f32 1.0, %v2142
        %v2144 = vrcp.pop %v1934
        %v2145 = vmul.f32 1.0, %v2144
        %v2146 = vrcp.pop %v1935
        %v2147 = vmul.f32 1.0, %v2146
        %v2148 = vrcp.pop %v1936
        %v2149 = vmul.f32 1.0, %v2148
        %v2150 = vrcp.pop %v1937
        %v2151 = vmul.f32 1.0, %v2150
        %v2152 = vrcp.pop %v1938
        %v2153 = vmul.f32 1.0, %v2152
        %v2154 = vrcp.pop %v1939
        %v2155 = vmul.f32 1.0, %v2154
        %v2156 = vrcp.pop %v1940
        %v2157 = vmul.f32 1.0, %v2156
        %v2158 = vrcp.pop %v1941
        %v2159 = vmul.f32 1.0, %v2158
        %v2160 = vrcp.pop %v1942
        %v2161 = vmul.f32 1.0, %v2160
        %v2162 = vrcp.pop %v1943
        %v2163 = vmul.f32 1.0, %v2162
        %v2164 = vrcp.pop %v1944
        %v2165 = vmul.f32 1.0, %v2164
        %v2166 = vrcp.pop %v1945
        %v2167 = vmul.f32 1.0, %v2166
        %v2168 = vrcp.pop %v1946
        %v2169 = vmul.f32 1.0, %v2168
        %v2170 = vrcp.pop %v1947
        %v2171 = vmul.f32 1.0, %v2170
        %2172 = vst [vmem:[%s233] sm:$0xff] %v1949
        %2173 = vst [vmem:[%s233 + $0x8] sm:$0xff] %v1951
        %2174 = vst [vmem:[%s233 + $0x10] sm:$0xff] %v1953
        %2175 = vst [vmem:[%s233 + $0x18] sm:$0xff] %v1955
        %2176 = vst [vmem:[%s233 + $0x20] sm:$0xff] %v1957
        %2177 = vst [vmem:[%s233 + $0x28] sm:$0xff] %v1959
        %2178 = vst [vmem:[%s233 + $0x30] sm:$0xff] %v1961
        %2179 = vst [vmem:[%s233 + $0x38] sm:$0xff] %v1963
        %2180 = vst [vmem:[%s233 + $0x40] sm:$0xff] %v1965
        %2181 = vst [vmem:[%s233 + $0x48] sm:$0xff] %v1967
        %2182 = vst [vmem:[%s233 + $0x50] sm:$0xff] %v1969
        %2183 = vst [vmem:[%s233 + $0x58] sm:$0xff] %v1971
        %2184 = vst [vmem:[%s233 + $0x60] sm:$0xff] %v1973
        %2185 = vst [vmem:[%s233 + $0x68] sm:$0xff] %v1975
        %2186 = vst [vmem:[%s233 + $0x70] sm:$0xff] %v1977
        %2187 = vst [vmem:[%s233 + $0x78] sm:$0xff] %v1979
        %2188 = vst [vmem:[%s233 + $0x80] sm:$0xff] %v1981
        %2189 = vst [vmem:[%s233 + $0x88] sm:$0xff] %v1983
        %2190 = vst [vmem:[%s233 + $0x90] sm:$0xff] %v1985
        %2191 = vst [vmem:[%s233 + $0x98] sm:$0xff] %v1987
        %2192 = vst [vmem:[%s233 + $0xa0] sm:$0xff] %v1989
        %2193 = vst [vmem:[%s233 + $0xa8] sm:$0xff] %v1991
        %2194 = vst [vmem:[%s233 + $0xb0] sm:$0xff] %v1993
        %2195 = vst [vmem:[%s233 + $0xb8] sm:$0xff] %v1995
        %2196 = vst [vmem:[%s233 + $0xc0] sm:$0xff] %v1997
        %2197 = vst [vmem:[%s233 + $0xc8] sm:$0xff] %v1999
        %2198 = vst [vmem:[%s233 + $0xd0] sm:$0xff] %v2001
        %2199 = vst [vmem:[%s233 + $0xd8] sm:$0xff] %v2003
        %2200 = vst [vmem:[%s233 + $0xe0] sm:$0xff] %v2005
        %2201 = vst [vmem:[%s233 + $0xe8] sm:$0xff] %v2007
        %2202 = vst [vmem:[%s233 + $0xf0] sm:$0xff] %v2009
        %2203 = vst [vmem:[%s233 + $0xf8] sm:$0xff] %v2011
        %2204 = vst [vmem:[%s233 + $0x100] sm:$0xff] %v2013
        %2205 = vst [vmem:[%s233 + $0x108] sm:$0xff] %v2015
        %2206 = vst [vmem:[%s233 + $0x110] sm:$0xff] %v2017
        %2207 = vst [vmem:[%s233 + $0x118] sm:$0xff] %v2019
        %2208 = vst [vmem:[%s233 + $0x120] sm:$0xff] %v2021
        %2209 = vst [vmem:[%s233 + $0x128] sm:$0xff] %v2023
        %2210 = vst [vmem:[%s233 + $0x130] sm:$0xff] %v2025
        %2211 = vst [vmem:[%s233 + $0x138] sm:$0xff] %v2027
        %2212 = vst [vmem:[%s233 + $0x140] sm:$0xff] %v2029
        %2213 = vst [vmem:[%s233 + $0x148] sm:$0xff] %v2031
        %2214 = vst [vmem:[%s233 + $0x150] sm:$0xff] %v2033
        %2215 = vst [vmem:[%s233 + $0x158] sm:$0xff] %v2035
        %2216 = vst [vmem:[%s233 + $0x160] sm:$0xff] %v2037
        %2217 = vst [vmem:[%s233 + $0x168] sm:$0xff] %v2039
        %2218 = vst [vmem:[%s233 + $0x170] sm:$0xff] %v2041
        %2219 = vst [vmem:[%s233 + $0x178] sm:$0xff] %v2043
        %2220 = vst [vmem:[%s233 + $0x180] sm:$0xff] %v2045
        %2221 = vst [vmem:[%s233 + $0x188] sm:$0xff] %v2047
        %2222 = vst [vmem:[%s233 + $0x190] sm:$0xff] %v2049
        %2223 = vst [vmem:[%s233 + $0x198] sm:$0xff] %v2051
        %2224 = vst [vmem:[%s233 + $0x1a0] sm:$0xff] %v2053
        %2225 = vst [vmem:[%s233 + $0x1a8] sm:$0xff] %v2055
        %2226 = vst [vmem:[%s233 + $0x1b0] sm:$0xff] %v2057
        %2227 = vst [vmem:[%s233 + $0x1b8] sm:$0xff] %v2059
        %2228 = vst [vmem:[%s233 + $0x1c0] sm:$0xff] %v2061
        %2229 = vst [vmem:[%s233 + $0x1c8] sm:$0xff] %v2063
        %2230 = vst [vmem:[%s233 + $0x1d0] sm:$0xff] %v2065
        %2231 = vst [vmem:[%s233 + $0x1d8] sm:$0xff] %v2067
        %2232 = vst [vmem:[%s233 + $0x1e0] sm:$0xff] %v2069
        %2233 = vst [vmem:[%s233 + $0x1e8] sm:$0xff] %v2071
        %2234 = vst [vmem:[%s233 + $0x1f0] sm:$0xff] %v2073
        %2235 = vst [vmem:[%s233 + $0x1f8] sm:$0xff] %v2075
        %2236 = vst [vmem:[%s233 + $0x200] sm:$0xff] %v2077
        %2237 = vst [vmem:[%s233 + $0x208] sm:$0xff] %v2079
        %2238 = vst [vmem:[%s233 + $0x210] sm:$0xff] %v2081
        %2239 = vst [vmem:[%s233 + $0x218] sm:$0xff] %v2083
        %2240 = vst [vmem:[%s233 + $0x220] sm:$0xff] %v2085
        %2241 = vst [vmem:[%s233 + $0x228] sm:$0xff] %v2087
        %2242 = vst [vmem:[%s233 + $0x230] sm:$0xff] %v2089
        %2243 = vst [vmem:[%s233 + $0x238] sm:$0xff] %v2091
        %2244 = vst [vmem:[%s233 + $0x240] sm:$0xff] %v2093
        %2245 = vst [vmem:[%s233 + $0x248] sm:$0xff] %v2095
        %2246 = vst [vmem:[%s233 + $0x250] sm:$0xff] %v2097
        %2247 = vst [vmem:[%s233 + $0x258] sm:$0xff] %v2099
        %2248 = vst [vmem:[%s233 + $0x260] sm:$0xff] %v2101
        %2249 = vst [vmem:[%s233 + $0x268] sm:$0xff] %v2103
        %2250 = vst [vmem:[%s233 + $0x270] sm:$0xff] %v2105
        %2251 = vst [vmem:[%s233 + $0x278] sm:$0xff] %v2107
        %2252 = vst [vmem:[%s233 + $0x280] sm:$0xff] %v2109
        %2253 = vst [vmem:[%s233 + $0x288] sm:$0xff] %v2111
        %2254 = vst [vmem:[%s233 + $0x290] sm:$0xff] %v2113
        %2255 = vst [vmem:[%s233 + $0x298] sm:$0xff] %v2115
        %2256 = vst [vmem:[%s233 + $0x2a0] sm:$0xff] %v2117
        %2257 = vst [vmem:[%s233 + $0x2a8] sm:$0xff] %v2119
        %2258 = vst [vmem:[%s233 + $0x2b0] sm:$0xff] %v2121
        %2259 = vst [vmem:[%s233 + $0x2b8] sm:$0xff] %v2123
        %2260 = vst [vmem:[%s233 + $0x2c0] sm:$0xff] %v2125
        %2261 = vst [vmem:[%s233 + $0x2c8] sm:$0xff] %v2127
        %2262 = vst [vmem:[%s233 + $0x2d0] sm:$0xff] %v2129
        %2263 = vst [vmem:[%s233 + $0x2d8] sm:$0xff] %v2131
        %2264 = vst [vmem:[%s233 + $0x2e0] sm:$0xff] %v2133
        %2265 = vst [vmem:[%s233 + $0x2e8] sm:$0xff] %v2135
        %2266 = vst [vmem:[%s233 + $0x2f0] sm:$0xff] %v2137
        %2267 = vst [vmem:[%s233 + $0x2f8] sm:$0xff] %v2139
        %2268 = vst [vmem:[%s233 + $0x300] sm:$0xff] %v2141
        %2269 = vst [vmem:[%s233 + $0x308] sm:$0xff] %v2143
        %2270 = vst [vmem:[%s233 + $0x310] sm:$0xff] %v2145
        %2271 = vst [vmem:[%s233 + $0x318] sm:$0xff] %v2147
        %2272 = vst [vmem:[%s233 + $0x320] sm:$0xff] %v2149
        %2273 = vst [vmem:[%s233 + $0x328] sm:$0xff] %v2151
        %2274 = vst [vmem:[%s233 + $0x330] sm:$0xff] %v2153
        %2275 = vst [vmem:[%s233 + $0x338] sm:$0xff] %v2155
        %2276 = vst [vmem:[%s233 + $0x340] sm:$0xff] %v2157
        %2277 = vst [vmem:[%s233 + $0x348] sm:$0xff] %v2159
        %2278 = vst [vmem:[%s233 + $0x350] sm:$0xff] %v2161
        %2279 = vst [vmem:[%s233 + $0x358] sm:$0xff] %v2163
        %2280 = vst [vmem:[%s233 + $0x360] sm:$0xff] %v2165
        %2281 = vst [vmem:[%s233 + $0x368] sm:$0xff] %v2167
        %2282 = vst [vmem:[%s233 + $0x370] sm:$0xff] %v2169
        %2283 = vst [vmem:[%s233 + $0x378] sm:$0xff] %v2171
        %s2284 = sand.u32 %s138, 1
        %s2285 = scalar_lea.sflag [#allocation4], %s2284
        %s2286 = sand.u32 %s138, 1
        %s2287 = smul.addr %s2286, 896
        %s2288 = scalar_lea.vmem [#allocation5], %s2287
        // Predicated region
        $region45: #{tpu_custom_call.1} parent=39 // pred_check
          %p2289 = pneg %p148
        $region46: #{tpu_custom_call.1} parent=39 // pred_check_branch
          %2291 = sbr.rel (%p2289) target = $region48
        $region47: #{tpu_custom_call.1} parent=39 // pred_region
          %s2292 = smul.u32 16, %s20
          %s2294 = ssub.s32 14336, 14336
          %2295 = vsyncadd %s2285, %s2294
          %s2296 = smul.addr %s2292, 7
          %s2297 = smul.addr %s2296, 128
          %s2298 = scalar_lea.hbm %s5, %s2297
          %s2299 = sshll.u32 %s2288, 4
          %s2300 = int_to_ptr.vmem [resolvable:$true] %s2299
          %2305 = dma.vmem_to_hbm [thread:$0]  %s2300, 14336, %s2298, %s2285, 896, 896, 56
        $region48: #{tpu_custom_call.1} parent=39 // pred_fallthru
          _
      $region40: #{tpu_custom_call.1} parent=5 // pred_fallthru
        _
      %p2306 = scmp.le.s32.totalorder 2, %s15
      // Predicated region
      $region49: #{tpu_custom_call.1} parent=5 // pred_check
        %p2307 = pneg %p2306
      $region50: #{tpu_custom_call.1} parent=5 // pred_check_branch
        %2309 = sbr.rel (%p2307) target = $region52
      $region51: #{tpu_custom_call.1} parent=5 // pred_region
        %s2310 = ssub.s32 %s15, 2
        // Predicated region
        $region53: #{tpu_custom_call.1} parent=51 // pred_check
          %p2311 = pneg %p154
        $region54: #{tpu_custom_call.1} parent=51 // pred_check_branch
          %2313 = sbr.rel (%p2311) target = $region56
        $region55: #{tpu_custom_call.1} parent=51 // pred_region
          %s2314 = sand.u32 %s139, 1
          %s2315 = scalar_lea.sflag [#allocation4], %s2314
          %s2316 = sand.u32 %s139, 1
          %s2317 = smul.addr %s2316, 896
          %s2318 = scalar_lea.vmem [#allocation5], %s2317
          %2319 = dma.done %s2315, 14336
        $region56: #{tpu_custom_call.1} parent=51 // pred_fallthru
          _
      $region52: #{tpu_custom_call.1} parent=5 // pred_fallthru
        _
    $region6: #{tpu_custom_call.1} parent=1 // loop_footer
      %s19 = sadd.s32 1, %s15
    $region7: #{tpu_custom_call.1} parent=1 // loop_footer_branch
      %14 = sbr.rel target = $region3
    $region8: #{tpu_custom_call.1} parent=1 // loop_exit
      _
    %2320 = vsyncpa [#allocation3], 1
    %s2321 = scalar_lea.sflag [#allocation3], 1
    %2322 = vsyncpa %s2321, 1
    %2323 = vsyncpa [#allocation4], 1
    %s2324 = scalar_lea.sflag [#allocation4], 1
    %2325 = vsyncpa %s2324, 1

</llo_original>
